<compile_context>
chip_gen: v5e
topology: v5e:2x2
jax: 0.10.0
libtpu: 0.0.40
codegen_flags: <defaults>
</compile_context>

<pallas_src>
import jax
import jax.numpy as jnp
from jax.experimental import pallas as pl
from jax.experimental.pallas import tpu as pltpu

_LANES = 128
_SUBLANES_BF16 = 16          # bf16 packs 16 rows per sublane tile
_MAX_TILE_ROWS = 512         # ~85% of HBM roofline; fits scoped VMEM on v5e/v6e/v7x in bf16
_K_FEATURES = 32 * 32 * 3    # 3072
_N_CLASSES = 10


def _round_up(v, m):
    return ((v + m - 1) // m) * m


def _linear_relu_kernel(x_ref, w_ref, b_ref, o_ref):
    """One batch tile: o = relu(x @ W^T + b).

    x_ref : (tb, K)      bf16 tile of the flattened input
    w_ref : (K, N_pad)   bf16 transposed weight (resident, constant block)
    b_ref : (1, N_pad)   f32 bias (resident, constant block)
    o_ref : (tb, N_pad)  f32 output tile
    """
    y = jnp.dot(x_ref[...], w_ref[...], preferred_element_type=jnp.float32)
    y = y + b_ref[...]
    o_ref[...] = jnp.maximum(y, 0.0).astype(o_ref.dtype)


def _tiled_call(x_bf16, w_pad, b_pad, tb):
    """Run the fused linear+ReLU over a batch slab whose rows are a multiple of tb."""
    Bt, K = x_bf16.shape
    N_pad = w_pad.shape[1]
    grid = (Bt // tb,)
    return pl.pallas_call(
        _linear_relu_kernel,
        out_shape=jax.ShapeDtypeStruct((Bt, N_pad), jnp.float32),
        grid_spec=pltpu.PrefetchScalarGridSpec(
            num_scalar_prefetch=0,
            grid=grid,
            in_specs=[
                pl.BlockSpec((tb, K), lambda i: (i, 0)),      # streaming x tile
                pl.BlockSpec((K, N_pad), lambda i: (0, 0)),   # resident W^T
                pl.BlockSpec((1, N_pad), lambda i: (0, 0)),   # resident bias
            ],
            out_specs=pl.BlockSpec((tb, N_pad), lambda i: (i, 0)),
        ),
        compiler_params=pltpu.CompilerParams(
            dimension_semantics=("parallel",),  # batch tiles independent (megacore on v7x)
        ),
    )(x_bf16, w_pad, b_pad)


def prepare_lazynet_params(w, b):
    """One-time setup: pad fc1 params to lane-dense width and cast W to bf16.

    w: (10, 3072) f32 (torch nn.Linear layout); b: (10,) f32.
    Returns (w_pad, b_pad): (3072, 128) bf16 and (1, 128) f32.
    Padding columns are zero, so ReLU keeps them at 0; they are sliced off in
    lazynet_forward.
    """
    n_out, k = w.shape
    n_pad = _round_up(n_out, _LANES)
    w_pad = jnp.pad(w.T.astype(jnp.bfloat16), ((0, 0), (0, n_pad - n_out)))
    b_pad = jnp.pad(b.astype(jnp.float32), (0, n_pad - n_out)).reshape(1, n_pad)
    return w_pad, b_pad


@jax.jit
def lazynet_forward(x, w_pad, b_pad):
    """x: (B, 3, 32, 32); w_pad: (3072, 128) bf16; b_pad: (1, 128) f32 -> (B, 10) f32."""
    B = x.shape[0]
    K = w_pad.shape[0]

    # Flatten exactly like torch's x.view(-1, num_flat_features); cast the
    # HBM-bound activation stream to bf16 (no-op if the producer already
    # emits bf16, which is the preferred path).
    x_flat = x.reshape(B, K).astype(jnp.bfloat16)

    # Pad batch only to the bf16 sublane tile (<= 15 ghost rows), not to tb.
    B_pad = _round_up(B, _SUBLANES_BF16)
    if B_pad != B:
        x_flat = jnp.pad(x_flat, ((0, B_pad - B), (0, 0)))

    # Main 512-row tiles + one small remainder call: no up-to-tb-1 ghost rows,
    # no wrapper-side zero-padded copy of x.
    main = (B_pad // _MAX_TILE_ROWS) * _MAX_TILE_ROWS
    rem = B_pad - main
    parts = []
    if main:
        parts.append(_tiled_call(x_flat[:main], w_pad, b_pad, _MAX_TILE_ROWS))
    if rem:
        parts.append(_tiled_call(x_flat[main:], w_pad, b_pad, rem))
    out_pad = parts[0] if len(parts) == 1 else jnp.concatenate(parts, axis=0)

    # Drop padded rows / columns.
    return out_pad[:B, :_N_CLASSES]


def _reference(x, w, b):
    x_flat = x.reshape(x.shape[0], -1)
    return jnp.maximum(x_flat @ w.T + b, 0.0)


if __name__ == "__main__":
    key = jax.random.PRNGKey(0)
    k_x, k_w, k_b = jax.random.split(key, 3)

    B, C, H, W = 2, 3, 32, 32            # LazyNet's fc1 expects 3*32*32 = 3072 features
    K_feat, N_out = C * H * W, 10

    x = jax.random.normal(k_x, (B, C, H, W), dtype=jnp.float32)

    # Deterministic init mimicking nn.Linear defaults: U(-1/sqrt(K), 1/sqrt(K)).
    bound = 1.0 / jnp.sqrt(jnp.float32(K_feat))
    w = jax.random.uniform(k_w, (N_out, K_feat), jnp.float32, -bound, bound)  # torch layout
    b = jax.random.uniform(k_b, (N_out,), jnp.float32, -bound, bound)

    w_pad, b_pad = prepare_lazynet_params(w, b)   # one-time setup, not per-forward

    out = lazynet_forward(x, w_pad, b_pad)
    out = jax.block_until_ready(out)

    ref = _reference(x, w, b)
    assert out.shape == (B, N_out)
    # bf16 inputs with f32 accumulation: compare to the f32 reference at a
    # loosened tolerance (per review).
    assert jnp.allclose(out, ref, atol=2e-2, rtol=2e-2), "mismatch vs reference"

    print("KERNEL_OK")
</pallas_src>

<mosaic_0001>
module attributes {stable_mosaic.version = 11 : i64} {
  func.func @_linear_relu_kernel(%arg0: i32, %arg1: memref<16x3072xbf16, #tpu.memory_space<vmem>>, %arg2: memref<3072x128xbf16, #tpu.memory_space<vmem>>, %arg3: memref<1x128xf32, #tpu.memory_space<vmem>>, %arg4: memref<16x128xf32, #tpu.memory_space<vmem>>) attributes {dimension_semantics = [#tpu.dimension_semantics<parallel>], iteration_bounds = array<i64: 1>, scalar_prefetch = 0 : i64, scratch_operands = 0 : i64, tpu.core_type = #tpu.core_type<tc>, window_params = [{transform_indices = @transform_0, window_bounds = array<i64: 16, 3072>}, {pipeline_mode = #tpu.pipeline_mode<synchronous>, transform_indices = @transform_1, window_bounds = array<i64: 3072, 128>}, {pipeline_mode = #tpu.pipeline_mode<synchronous>, transform_indices = @transform_2, window_bounds = array<i64: 1, 128>}, {transform_indices = @transform_3, window_bounds = array<i64: 16, 128>}]} {
    %c0 = arith.constant 0 : index
    %c0_0 = arith.constant 0 : index
    %0 = vector.load %arg1[%c0, %c0_0] : memref<16x3072xbf16, #tpu.memory_space<vmem>>, vector<16x3072xbf16>
    %c0_1 = arith.constant 0 : index
    %c0_2 = arith.constant 0 : index
    %1 = vector.load %arg2[%c0_1, %c0_2] : memref<3072x128xbf16, #tpu.memory_space<vmem>>, vector<3072x128xbf16>
    %cst = arith.constant dense<0.000000e+00> : vector<16x128xf32>
    %2 = tpu.matmul %0, %1, %cst {dimension_numbers = #tpu.dot_dimension_numbers<[1], [0], [0], [1], [0, 0, 1, 1], [], []>} : vector<16x3072xbf16>, vector<3072x128xbf16>, vector<16x128xf32> -> vector<16x128xf32>
    %c0_3 = arith.constant 0 : index
    %c0_4 = arith.constant 0 : index
    %3 = vector.load %arg3[%c0_3, %c0_4] : memref<1x128xf32, #tpu.memory_space<vmem>>, vector<1x128xf32>
    %4 = vector.broadcast %3 : vector<1x128xf32> to vector<16x128xf32>
    %5 = arith.addf %2, %4 : vector<16x128xf32>
    %cst_5 = arith.constant 0.000000e+00 : f32
    %6 = vector.broadcast %cst_5 : f32 to vector<16x128xf32>
    %7 = arith.maximumf %5, %6 : vector<16x128xf32>
    %c0_6 = arith.constant 0 : index
    %c0_7 = arith.constant 0 : index
    %8 = vector.load %arg4[%c0_6, %c0_7] : memref<16x128xf32, #tpu.memory_space<vmem>>, vector<16x128xf32>
    tpu.vector_store %arg4[%c0_6, %c0_7], %7 {strides = array<i32>} : memref<16x128xf32, #tpu.memory_space<vmem>>, vector<16x128xf32>,
    return
  }
  func.func @transform_0(%arg0: i32) -> (i32, i32) {
    %c0_i32 = arith.constant 0 : i32
    %c0_i32_0 = arith.constant 0 : i32
    return %arg0, %c0_i32 : i32, i32
  }
  func.func @transform_1(%arg0: i32) -> (i32, i32) {
    %c0_i32 = arith.constant 0 : i32
    %c0_i32_0 = arith.constant 0 : i32
    %c0_i32_1 = arith.constant 0 : i32
    return %c0_i32, %c0_i32_0 : i32, i32
  }
  func.func @transform_2(%arg0: i32) -> (i32, i32) {
    %c0_i32 = arith.constant 0 : i32
    %c0_i32_0 = arith.constant 0 : i32
    %c0_i32_1 = arith.constant 0 : i32
    return %c0_i32, %c0_i32_0 : i32, i32
  }
  func.func @transform_3(%arg0: i32) -> (i32, i32) {
    %c0_i32 = arith.constant 0 : i32
    %c0_i32_0 = arith.constant 0 : i32
    return %arg0, %c0_i32 : i32, i32
  }
}

</mosaic_0001>

<llo_original>
// kernel: lazynet_forward.1
$region0: #{lazynet_forward.1}
  #allocation0 [shape = 'u32[]', space=smem, size = 0x4, offset = 0x4, fixed_abs, tag = 'smem constant byte address 0x4 - core index']
  #allocation1 [shape = 'u32[72,128]{1,0:T(1,128)}', space=vmem, size = 0x9000, scoped, tag = 'internal scratch']
  %s0 = inlined_call_operand.vmem [shape: bf16[16,3072], index: 0, kind: input, shape index: {}]
  %s1 = inlined_call_operand.hbm [shape: bf16[3072,128], index: 1, kind: input, shape index: {}]
  %s2 = inlined_call_operand.vmem [shape: f32[1,128], index: 2, kind: input, shape index: {}]
  %s3 = inlined_call_operand.vmem [shape: f32[16,128], index: 3, kind: output, shape index: {}]
  %s4 = sld [smem:[#allocation0]]
  $region26: #{lazynet_forward.1} parent=0
    _
  %s6 = ssub.s32 1, %s4
  %s7 = scalar_select 0, %s6, %s4
  $region1: #{lazynet_forward.1} parent=0
    #allocation2 [shape = 'u8[786432]{0}', space=vmem, size = 0xc0000, scoped, tag = 'input window, operand 1, single buffered']
    #allocation3 [shape = 's32[1]{0}', space=sflag, size = 0x4, scoped, tag = 'scoped memory for lazynet_forward.1']
    %8 = vsyncpa [#allocation3], 0
    // Predicated region
    $region2: #{lazynet_forward.1} parent=1 // pred_check
      _
    $region3: #{lazynet_forward.1} parent=1 // pred_check_branch
      %10 = sbr.rel (0) target = $region5
    $region4: #{lazynet_forward.1} parent=1 // pred_region
      _
    $region5: #{lazynet_forward.1} parent=1 // pred_fallthru
      _
    // Predicated region
    $region6: #{lazynet_forward.1} parent=1 // pred_check
      _
    $region7: #{lazynet_forward.1} parent=1 // pred_check_branch
      %12 = sbr.rel (0) target = $region9
    $region8: #{lazynet_forward.1} parent=1 // pred_region
      %14 = vsyncadd [#allocation3], 0
      %s15 = sshll.u32 %s1, 4
      %s16 = int_to_ptr.hbm [resolvable:$true] %s15
      %s17 = sshll.u32 [#allocation2], 4
      %s18 = int_to_ptr.vmem [resolvable:$true] %s17
      %23 = dma.hbm_to_vmem [thread:$0]  %s16, 24576, %s18, [#allocation3], 64, 64, 4
    $region9: #{lazynet_forward.1} parent=1 // pred_fallthru
      _
    // Predicated region
    $region10: #{lazynet_forward.1} parent=1 // pred_check
      _
    $region11: #{lazynet_forward.1} parent=1 // pred_check_branch
      %25 = sbr.rel (0) target = $region13
    $region12: #{lazynet_forward.1} parent=1 // pred_region
      _
    $region13: #{lazynet_forward.1} parent=1 // pred_fallthru
      _
    // Predicated region
    $region14: #{lazynet_forward.1} parent=1 // pred_check
      _
    $region15: #{lazynet_forward.1} parent=1 // pred_check_branch
      %27 = sbr.rel (0) target = $region17
    $region16: #{lazynet_forward.1} parent=1 // pred_region
      %29 = dma.done [#allocation3], 24576
    $region17: #{lazynet_forward.1} parent=1 // pred_fallthru
      _
    %v30 = vld [vmem:[%s0] sm:$0xff]
    %v31 = vld [vmem:[%s0 + $0x8] sm:$0xff]
    %v32 = vld [vmem:[%s0 + $0x10] sm:$0xff]
    %v33 = vld [vmem:[%s0 + $0x18] sm:$0xff]
    %v34 = vld [vmem:[%s0 + $0x20] sm:$0xff]
    %v35 = vld [vmem:[%s0 + $0x28] sm:$0xff]
    %v36 = vld [vmem:[%s0 + $0x30] sm:$0xff]
    %v37 = vld [vmem:[%s0 + $0x38] sm:$0xff]
    %v38 = vld [vmem:[%s0 + $0x40] sm:$0xff]
    %v39 = vld [vmem:[%s0 + $0x48] sm:$0xff]
    %v40 = vld [vmem:[%s0 + $0x50] sm:$0xff]
    %v41 = vld [vmem:[%s0 + $0x58] sm:$0xff]
    %v42 = vld [vmem:[%s0 + $0x60] sm:$0xff]
    %v43 = vld [vmem:[%s0 + $0x68] sm:$0xff]
    %v44 = vld [vmem:[%s0 + $0x70] sm:$0xff]
    %v45 = vld [vmem:[%s0 + $0x78] sm:$0xff]
    %v46 = vld [vmem:[%s0 + $0x80] sm:$0xff]
    %v47 = vld [vmem:[%s0 + $0x88] sm:$0xff]
    %v48 = vld [vmem:[%s0 + $0x90] sm:$0xff]
    %v49 = vld [vmem:[%s0 + $0x98] sm:$0xff]
    %v50 = vld [vmem:[%s0 + $0xa0] sm:$0xff]
    %v51 = vld [vmem:[%s0 + $0xa8] sm:$0xff]
    %v52 = vld [vmem:[%s0 + $0xb0] sm:$0xff]
    %v53 = vld [vmem:[%s0 + $0xb8] sm:$0xff]
    %v54 = vld [vmem:[#allocation2] sm:$0xf]
    %v55 = vld [vmem:[#allocation2 + $0x4] sm:$0xf]
    %v56 = vld [vmem:[#allocation2 + $0x8] sm:$0xf]
    %v57 = vld [vmem:[#allocation2 + $0xc] sm:$0xf]
    %v58 = vld [vmem:[#allocation2 + $0x10] sm:$0xf]
    %v59 = vld [vmem:[#allocation2 + $0x14] sm:$0xf]
    %v60 = vld [vmem:[#allocation2 + $0x18] sm:$0xf]
    %v61 = vld [vmem:[#allocation2 + $0x1c] sm:$0xf]
    %v62 = vld [vmem:[#allocation2 + $0x20] sm:$0xf]
    %v63 = vld [vmem:[#allocation2 + $0x24] sm:$0xf]
    %v64 = vld [vmem:[#allocation2 + $0x28] sm:$0xf]
    %v65 = vld [vmem:[#allocation2 + $0x2c] sm:$0xf]
    %v66 = vld [vmem:[#allocation2 + $0x30] sm:$0xf]
    %v67 = vld [vmem:[#allocation2 + $0x34] sm:$0xf]
    %v68 = vld [vmem:[#allocation2 + $0x38] sm:$0xf]
    %v69 = vld [vmem:[#allocation2 + $0x3c] sm:$0xf]
    %v70 = vld [vmem:[#allocation2 + $0x40] sm:$0xf]
    %v71 = vld [vmem:[#allocation2 + $0x44] sm:$0xf]
    %v72 = vld [vmem:[#allocation2 + $0x48] sm:$0xf]
    %v73 = vld [vmem:[#allocation2 + $0x4c] sm:$0xf]
    %v74 = vld [vmem:[#allocation2 + $0x50] sm:$0xf]
    %v75 = vld [vmem:[#allocation2 + $0x54] sm:$0xf]
    %v76 = vld [vmem:[#allocation2 + $0x58] sm:$0xf]
    %v77 = vld [vmem:[#allocation2 + $0x5c] sm:$0xf]
    %v78 = vld [vmem:[#allocation2 + $0x60] sm:$0xf]
    %v79 = vld [vmem:[#allocation2 + $0x64] sm:$0xf]
    %v80 = vld [vmem:[#allocation2 + $0x68] sm:$0xf]
    %v81 = vld [vmem:[#allocation2 + $0x6c] sm:$0xf]
    %v82 = vld [vmem:[#allocation2 + $0x70] sm:$0xf]
    %v83 = vld [vmem:[#allocation2 + $0x74] sm:$0xf]
    %v84 = vld [vmem:[#allocation2 + $0x78] sm:$0xf]
    %v85 = vld [vmem:[#allocation2 + $0x7c] sm:$0xf]
    %v86 = vld [vmem:[#allocation2 + $0x80] sm:$0xf]
    %v87 = vld [vmem:[#allocation2 + $0x84] sm:$0xf]
    %v88 = vld [vmem:[#allocation2 + $0x88] sm:$0xf]
    %v89 = vld [vmem:[#allocation2 + $0x8c] sm:$0xf]
    %v90 = vld [vmem:[#allocation2 + $0x90] sm:$0xf]
    %v91 = vld [vmem:[#allocation2 + $0x94] sm:$0xf]
    %v92 = vld [vmem:[#allocation2 + $0x98] sm:$0xf]
    %v93 = vld [vmem:[#allocation2 + $0x9c] sm:$0xf]
    %v94 = vld [vmem:[#allocation2 + $0xa0] sm:$0xf]
    %v95 = vld [vmem:[#allocation2 + $0xa4] sm:$0xf]
    %v96 = vld [vmem:[#allocation2 + $0xa8] sm:$0xf]
    %v97 = vld [vmem:[#allocation2 + $0xac] sm:$0xf]
    %v98 = vld [vmem:[#allocation2 + $0xb0] sm:$0xf]
    %v99 = vld [vmem:[#allocation2 + $0xb4] sm:$0xf]
    %v100 = vld [vmem:[#allocation2 + $0xb8] sm:$0xf]
    %v101 = vld [vmem:[#allocation2 + $0xbc] sm:$0xf]
    %v102 = vld [vmem:[#allocation2 + $0xc0] sm:$0xf]
    %v103 = vld [vmem:[#allocation2 + $0xc4] sm:$0xf]
    %v104 = vld [vmem:[#allocation2 + $0xc8] sm:$0xf]
    %v105 = vld [vmem:[#allocation2 + $0xcc] sm:$0xf]
    %v106 = vld [vmem:[#allocation2 + $0xd0] sm:$0xf]
    %v107 = vld [vmem:[#allocation2 + $0xd4] sm:$0xf]
    %v108 = vld [vmem:[#allocation2 + $0xd8] sm:$0xf]
    %v109 = vld [vmem:[#allocation2 + $0xdc] sm:$0xf]
    %v110 = vld [vmem:[#allocation2 + $0xe0] sm:$0xf]
    %v111 = vld [vmem:[#allocation2 + $0xe4] sm:$0xf]
    %v112 = vld [vmem:[#allocation2 + $0xe8] sm:$0xf]
    %v113 = vld [vmem:[#allocation2 + $0xec] sm:$0xf]
    %v114 = vld [vmem:[#allocation2 + $0xf0] sm:$0xf]
    %v115 = vld [vmem:[#allocation2 + $0xf4] sm:$0xf]
    %v116 = vld [vmem:[#allocation2 + $0xf8] sm:$0xf]
    %v117 = vld [vmem:[#allocation2 + $0xfc] sm:$0xf]
    %v118 = vld [vmem:[#allocation2 + $0x100] sm:$0xf]
    %v119 = vld [vmem:[#allocation2 + $0x104] sm:$0xf]
    %v120 = vld [vmem:[#allocation2 + $0x108] sm:$0xf]
    %v121 = vld [vmem:[#allocation2 + $0x10c] sm:$0xf]
    %v122 = vld [vmem:[#allocation2 + $0x110] sm:$0xf]
    %v123 = vld [vmem:[#allocation2 + $0x114] sm:$0xf]
    %v124 = vld [vmem:[#allocation2 + $0x118] sm:$0xf]
    %v125 = vld [vmem:[#allocation2 + $0x11c] sm:$0xf]
    %v126 = vld [vmem:[#allocation2 + $0x120] sm:$0xf]
    %v127 = vld [vmem:[#allocation2 + $0x124] sm:$0xf]
    %v128 = vld [vmem:[#allocation2 + $0x128] sm:$0xf]
    %v129 = vld [vmem:[#allocation2 + $0x12c] sm:$0xf]
    %v130 = vld [vmem:[#allocation2 + $0x130] sm:$0xf]
    %v131 = vld [vmem:[#allocation2 + $0x134] sm:$0xf]
    %v132 = vld [vmem:[#allocation2 + $0x138] sm:$0xf]
    %v133 = vld [vmem:[#allocation2 + $0x13c] sm:$0xf]
    %v134 = vld [vmem:[#allocation2 + $0x140] sm:$0xf]
    %v135 = vld [vmem:[#allocation2 + $0x144] sm:$0xf]
    %v136 = vld [vmem:[#allocation2 + $0x148] sm:$0xf]
    %v137 = vld [vmem:[#allocation2 + $0x14c] sm:$0xf]
    %v138 = vld [vmem:[#allocation2 + $0x150] sm:$0xf]
    %v139 = vld [vmem:[#allocation2 + $0x154] sm:$0xf]
    %v140 = vld [vmem:[#allocation2 + $0x158] sm:$0xf]
    %v141 = vld [vmem:[#allocation2 + $0x15c] sm:$0xf]
    %v142 = vld [vmem:[#allocation2 + $0x160] sm:$0xf]
    %v143 = vld [vmem:[#allocation2 + $0x164] sm:$0xf]
    %v144 = vld [vmem:[#allocation2 + $0x168] sm:$0xf]
    %v145 = vld [vmem:[#allocation2 + $0x16c] sm:$0xf]
    %v146 = vld [vmem:[#allocation2 + $0x170] sm:$0xf]
    %v147 = vld [vmem:[#allocation2 + $0x174] sm:$0xf]
    %v148 = vld [vmem:[#allocation2 + $0x178] sm:$0xf]
    %v149 = vld [vmem:[#allocation2 + $0x17c] sm:$0xf]
    %v150 = vld [vmem:[#allocation2 + $0x180] sm:$0xf]
    %v151 = vld [vmem:[#allocation2 + $0x184] sm:$0xf]
    %v152 = vld [vmem:[#allocation2 + $0x188] sm:$0xf]
    %v153 = vld [vmem:[#allocation2 + $0x18c] sm:$0xf]
    %v154 = vld [vmem:[#allocation2 + $0x190] sm:$0xf]
    %v155 = vld [vmem:[#allocation2 + $0x194] sm:$0xf]
    %v156 = vld [vmem:[#allocation2 + $0x198] sm:$0xf]
    %v157 = vld [vmem:[#allocation2 + $0x19c] sm:$0xf]
    %v158 = vld [vmem:[#allocation2 + $0x1a0] sm:$0xf]
    %v159 = vld [vmem:[#allocation2 + $0x1a4] sm:$0xf]
    %v160 = vld [vmem:[#allocation2 + $0x1a8] sm:$0xf]
    %v161 = vld [vmem:[#allocation2 + $0x1ac] sm:$0xf]
    %v162 = vld [vmem:[#allocation2 + $0x1b0] sm:$0xf]
    %v163 = vld [vmem:[#allocation2 + $0x1b4] sm:$0xf]
    %v164 = vld [vmem:[#allocation2 + $0x1b8] sm:$0xf]
    %v165 = vld [vmem:[#allocation2 + $0x1bc] sm:$0xf]
    %v166 = vld [vmem:[#allocation2 + $0x1c0] sm:$0xf]
    %v167 = vld [vmem:[#allocation2 + $0x1c4] sm:$0xf]
    %v168 = vld [vmem:[#allocation2 + $0x1c8] sm:$0xf]
    %v169 = vld [vmem:[#allocation2 + $0x1cc] sm:$0xf]
    %v170 = vld [vmem:[#allocation2 + $0x1d0] sm:$0xf]
    %v171 = vld [vmem:[#allocation2 + $0x1d4] sm:$0xf]
    %v172 = vld [vmem:[#allocation2 + $0x1d8] sm:$0xf]
    %v173 = vld [vmem:[#allocation2 + $0x1dc] sm:$0xf]
    %v174 = vld [vmem:[#allocation2 + $0x1e0] sm:$0xf]
    %v175 = vld [vmem:[#allocation2 + $0x1e4] sm:$0xf]
    %v176 = vld [vmem:[#allocation2 + $0x1e8] sm:$0xf]
    %v177 = vld [vmem:[#allocation2 + $0x1ec] sm:$0xf]
    %v178 = vld [vmem:[#allocation2 + $0x1f0] sm:$0xf]
    %v179 = vld [vmem:[#allocation2 + $0x1f4] sm:$0xf]
    %v180 = vld [vmem:[#allocation2 + $0x1f8] sm:$0xf]
    %v181 = vld [vmem:[#allocation2 + $0x1fc] sm:$0xf]
    %v182 = vld [vmem:[#allocation2 + $0x200] sm:$0xf]
    %v183 = vld [vmem:[#allocation2 + $0x204] sm:$0xf]
    %v184 = vld [vmem:[#allocation2 + $0x208] sm:$0xf]
    %v185 = vld [vmem:[#allocation2 + $0x20c] sm:$0xf]
    %v186 = vld [vmem:[#allocation2 + $0x210] sm:$0xf]
    %v187 = vld [vmem:[#allocation2 + $0x214] sm:$0xf]
    %v188 = vld [vmem:[#allocation2 + $0x218] sm:$0xf]
    %v189 = vld [vmem:[#allocation2 + $0x21c] sm:$0xf]
    %v190 = vld [vmem:[#allocation2 + $0x220] sm:$0xf]
    %v191 = vld [vmem:[#allocation2 + $0x224] sm:$0xf]
    %v192 = vld [vmem:[#allocation2 + $0x228] sm:$0xf]
    %v193 = vld [vmem:[#allocation2 + $0x22c] sm:$0xf]
    %v194 = vld [vmem:[#allocation2 + $0x230] sm:$0xf]
    %v195 = vld [vmem:[#allocation2 + $0x234] sm:$0xf]
    %v196 = vld [vmem:[#allocation2 + $0x238] sm:$0xf]
    %v197 = vld [vmem:[#allocation2 + $0x23c] sm:$0xf]
    %v198 = vld [vmem:[#allocation2 + $0x240] sm:$0xf]
    %v199 = vld [vmem:[#allocation2 + $0x244] sm:$0xf]
    %v200 = vld [vmem:[#allocation2 + $0x248] sm:$0xf]
    %v201 = vld [vmem:[#allocation2 + $0x24c] sm:$0xf]
    %v202 = vld [vmem:[#allocation2 + $0x250] sm:$0xf]
    %v203 = vld [vmem:[#allocation2 + $0x254] sm:$0xf]
    %v204 = vld [vmem:[#allocation2 + $0x258] sm:$0xf]
    %v205 = vld [vmem:[#allocation2 + $0x25c] sm:$0xf]
    %v206 = vld [vmem:[#allocation2 + $0x260] sm:$0xf]
    %v207 = vld [vmem:[#allocation2 + $0x264] sm:$0xf]
    %v208 = vld [vmem:[#allocation2 + $0x268] sm:$0xf]
    %v209 = vld [vmem:[#allocation2 + $0x26c] sm:$0xf]
    %v210 = vld [vmem:[#allocation2 + $0x270] sm:$0xf]
    %v211 = vld [vmem:[#allocation2 + $0x274] sm:$0xf]
    %v212 = vld [vmem:[#allocation2 + $0x278] sm:$0xf]
    %v213 = vld [vmem:[#allocation2 + $0x27c] sm:$0xf]
    %v214 = vld [vmem:[#allocation2 + $0x280] sm:$0xf]
    %v215 = vld [vmem:[#allocation2 + $0x284] sm:$0xf]
    %v216 = vld [vmem:[#allocation2 + $0x288] sm:$0xf]
    %v217 = vld [vmem:[#allocation2 + $0x28c] sm:$0xf]
    %v218 = vld [vmem:[#allocation2 + $0x290] sm:$0xf]
    %v219 = vld [vmem:[#allocation2 + $0x294] sm:$0xf]
    %v220 = vld [vmem:[#allocation2 + $0x298] sm:$0xf]
    %v221 = vld [vmem:[#allocation2 + $0x29c] sm:$0xf]
    %v222 = vld [vmem:[#allocation2 + $0x2a0] sm:$0xf]
    %v223 = vld [vmem:[#allocation2 + $0x2a4] sm:$0xf]
    %v224 = vld [vmem:[#allocation2 + $0x2a8] sm:$0xf]
    %v225 = vld [vmem:[#allocation2 + $0x2ac] sm:$0xf]
    %v226 = vld [vmem:[#allocation2 + $0x2b0] sm:$0xf]
    %v227 = vld [vmem:[#allocation2 + $0x2b4] sm:$0xf]
    %v228 = vld [vmem:[#allocation2 + $0x2b8] sm:$0xf]
    %v229 = vld [vmem:[#allocation2 + $0x2bc] sm:$0xf]
    %v230 = vld [vmem:[#allocation2 + $0x2c0] sm:$0xf]
    %v231 = vld [vmem:[#allocation2 + $0x2c4] sm:$0xf]
    %v232 = vld [vmem:[#allocation2 + $0x2c8] sm:$0xf]
    %v233 = vld [vmem:[#allocation2 + $0x2cc] sm:$0xf]
    %v234 = vld [vmem:[#allocation2 + $0x2d0] sm:$0xf]
    %v235 = vld [vmem:[#allocation2 + $0x2d4] sm:$0xf]
    %v236 = vld [vmem:[#allocation2 + $0x2d8] sm:$0xf]
    %v237 = vld [vmem:[#allocation2 + $0x2dc] sm:$0xf]
    %v238 = vld [vmem:[#allocation2 + $0x2e0] sm:$0xf]
    %v239 = vld [vmem:[#allocation2 + $0x2e4] sm:$0xf]
    %v240 = vld [vmem:[#allocation2 + $0x2e8] sm:$0xf]
    %v241 = vld [vmem:[#allocation2 + $0x2ec] sm:$0xf]
    %v242 = vld [vmem:[#allocation2 + $0x2f0] sm:$0xf]
    %v243 = vld [vmem:[#allocation2 + $0x2f4] sm:$0xf]
    %v244 = vld [vmem:[#allocation2 + $0x2f8] sm:$0xf]
    %v245 = vld [vmem:[#allocation2 + $0x2fc] sm:$0xf]
    %v246 = vld [vmem:[#allocation2 + $0x300] sm:$0xf]
    %v247 = vld [vmem:[#allocation2 + $0x304] sm:$0xf]
    %v248 = vld [vmem:[#allocation2 + $0x308] sm:$0xf]
    %v249 = vld [vmem:[#allocation2 + $0x30c] sm:$0xf]
    %v250 = vld [vmem:[#allocation2 + $0x310] sm:$0xf]
    %v251 = vld [vmem:[#allocation2 + $0x314] sm:$0xf]
    %v252 = vld [vmem:[#allocation2 + $0x318] sm:$0xf]
    %v253 = vld [vmem:[#allocation2 + $0x31c] sm:$0xf]
    %v254 = vld [vmem:[#allocation2 + $0x320] sm:$0xf]
    %v255 = vld [vmem:[#allocation2 + $0x324] sm:$0xf]
    %v256 = vld [vmem:[#allocation2 + $0x328] sm:$0xf]
    %v257 = vld [vmem:[#allocation2 + $0x32c] sm:$0xf]
    %v258 = vld [vmem:[#allocation2 + $0x330] sm:$0xf]
    %v259 = vld [vmem:[#allocation2 + $0x334] sm:$0xf]
    %v260 = vld [vmem:[#allocation2 + $0x338] sm:$0xf]
    %v261 = vld [vmem:[#allocation2 + $0x33c] sm:$0xf]
    %v262 = vld [vmem:[#allocation2 + $0x340] sm:$0xf]
    %v263 = vld [vmem:[#allocation2 + $0x344] sm:$0xf]
    %v264 = vld [vmem:[#allocation2 + $0x348] sm:$0xf]
    %v265 = vld [vmem:[#allocation2 + $0x34c] sm:$0xf]
    %v266 = vld [vmem:[#allocation2 + $0x350] sm:$0xf]
    %v267 = vld [vmem:[#allocation2 + $0x354] sm:$0xf]
    %v268 = vld [vmem:[#allocation2 + $0x358] sm:$0xf]
    %v269 = vld [vmem:[#allocation2 + $0x35c] sm:$0xf]
    %v270 = vld [vmem:[#allocation2 + $0x360] sm:$0xf]
    %v271 = vld [vmem:[#allocation2 + $0x364] sm:$0xf]
    %v272 = vld [vmem:[#allocation2 + $0x368] sm:$0xf]
    %v273 = vld [vmem:[#allocation2 + $0x36c] sm:$0xf]
    %v274 = vld [vmem:[#allocation2 + $0x370] sm:$0xf]
    %v275 = vld [vmem:[#allocation2 + $0x374] sm:$0xf]
    %v276 = vld [vmem:[#allocation2 + $0x378] sm:$0xf]
    %v277 = vld [vmem:[#allocation2 + $0x37c] sm:$0xf]
    %v278 = vld [vmem:[#allocation2 + $0x380] sm:$0xf]
    %v279 = vld [vmem:[#allocation2 + $0x384] sm:$0xf]
    %v280 = vld [vmem:[#allocation2 + $0x388] sm:$0xf]
    %v281 = vld [vmem:[#allocation2 + $0x38c] sm:$0xf]
    %v282 = vld [vmem:[#allocation2 + $0x390] sm:$0xf]
    %v283 = vld [vmem:[#allocation2 + $0x394] sm:$0xf]
    %v284 = vld [vmem:[#allocation2 + $0x398] sm:$0xf]
    %v285 = vld [vmem:[#allocation2 + $0x39c] sm:$0xf]
    %v286 = vld [vmem:[#allocation2 + $0x3a0] sm:$0xf]
    %v287 = vld [vmem:[#allocation2 + $0x3a4] sm:$0xf]
    %v288 = vld [vmem:[#allocation2 + $0x3a8] sm:$0xf]
    %v289 = vld [vmem:[#allocation2 + $0x3ac] sm:$0xf]
    %v290 = vld [vmem:[#allocation2 + $0x3b0] sm:$0xf]
    %v291 = vld [vmem:[#allocation2 + $0x3b4] sm:$0xf]
    %v292 = vld [vmem:[#allocation2 + $0x3b8] sm:$0xf]
    %v293 = vld [vmem:[#allocation2 + $0x3bc] sm:$0xf]
    %v294 = vld [vmem:[#allocation2 + $0x3c0] sm:$0xf]
    %v295 = vld [vmem:[#allocation2 + $0x3c4] sm:$0xf]
    %v296 = vld [vmem:[#allocation2 + $0x3c8] sm:$0xf]
    %v297 = vld [vmem:[#allocation2 + $0x3cc] sm:$0xf]
    %v298 = vld [vmem:[#allocation2 + $0x3d0] sm:$0xf]
    %v299 = vld [vmem:[#allocation2 + $0x3d4] sm:$0xf]
    %v300 = vld [vmem:[#allocation2 + $0x3d8] sm:$0xf]
    %v301 = vld [vmem:[#allocation2 + $0x3dc] sm:$0xf]
    %v302 = vld [vmem:[#allocation2 + $0x3e0] sm:$0xf]
    %v303 = vld [vmem:[#allocation2 + $0x3e4] sm:$0xf]
    %v304 = vld [vmem:[#allocation2 + $0x3e8] sm:$0xf]
    %v305 = vld [vmem:[#allocation2 + $0x3ec] sm:$0xf]
    %v306 = vld [vmem:[#allocation2 + $0x3f0] sm:$0xf]
    %v307 = vld [vmem:[#allocation2 + $0x3f4] sm:$0xf]
    %v308 = vld [vmem:[#allocation2 + $0x3f8] sm:$0xf]
    %v309 = vld [vmem:[#allocation2 + $0x3fc] sm:$0xf]
    %v310 = vld [vmem:[#allocation2 + $0x400] sm:$0xf]
    %v311 = vld [vmem:[#allocation2 + $0x404] sm:$0xf]
    %v312 = vld [vmem:[#allocation2 + $0x408] sm:$0xf]
    %v313 = vld [vmem:[#allocation2 + $0x40c] sm:$0xf]
    %v314 = vld [vmem:[#allocation2 + $0x410] sm:$0xf]
    %v315 = vld [vmem:[#allocation2 + $0x414] sm:$0xf]
    %v316 = vld [vmem:[#allocation2 + $0x418] sm:$0xf]
    %v317 = vld [vmem:[#allocation2 + $0x41c] sm:$0xf]
    %v318 = vld [vmem:[#allocation2 + $0x420] sm:$0xf]
    %v319 = vld [vmem:[#allocation2 + $0x424] sm:$0xf]
    %v320 = vld [vmem:[#allocation2 + $0x428] sm:$0xf]
    %v321 = vld [vmem:[#allocation2 + $0x42c] sm:$0xf]
    %v322 = vld [vmem:[#allocation2 + $0x430] sm:$0xf]
    %v323 = vld [vmem:[#allocation2 + $0x434] sm:$0xf]
    %v324 = vld [vmem:[#allocation2 + $0x438] sm:$0xf]
    %v325 = vld [vmem:[#allocation2 + $0x43c] sm:$0xf]
    %v326 = vld [vmem:[#allocation2 + $0x440] sm:$0xf]
    %v327 = vld [vmem:[#allocation2 + $0x444] sm:$0xf]
    %v328 = vld [vmem:[#allocation2 + $0x448] sm:$0xf]
    %v329 = vld [vmem:[#allocation2 + $0x44c] sm:$0xf]
    %v330 = vld [vmem:[#allocation2 + $0x450] sm:$0xf]
    %v331 = vld [vmem:[#allocation2 + $0x454] sm:$0xf]
    %v332 = vld [vmem:[#allocation2 + $0x458] sm:$0xf]
    %v333 = vld [vmem:[#allocation2 + $0x45c] sm:$0xf]
    %v334 = vld [vmem:[#allocation2 + $0x460] sm:$0xf]
    %v335 = vld [vmem:[#allocation2 + $0x464] sm:$0xf]
    %v336 = vld [vmem:[#allocation2 + $0x468] sm:$0xf]
    %v337 = vld [vmem:[#allocation2 + $0x46c] sm:$0xf]
    %v338 = vld [vmem:[#allocation2 + $0x470] sm:$0xf]
    %v339 = vld [vmem:[#allocation2 + $0x474] sm:$0xf]
    %v340 = vld [vmem:[#allocation2 + $0x478] sm:$0xf]
    %v341 = vld [vmem:[#allocation2 + $0x47c] sm:$0xf]
    %v342 = vld [vmem:[#allocation2 + $0x480] sm:$0xf]
    %v343 = vld [vmem:[#allocation2 + $0x484] sm:$0xf]
    %v344 = vld [vmem:[#allocation2 + $0x488] sm:$0xf]
    %v345 = vld [vmem:[#allocation2 + $0x48c] sm:$0xf]
    %v346 = vld [vmem:[#allocation2 + $0x490] sm:$0xf]
    %v347 = vld [vmem:[#allocation2 + $0x494] sm:$0xf]
    %v348 = vld [vmem:[#allocation2 + $0x498] sm:$0xf]
    %v349 = vld [vmem:[#allocation2 + $0x49c] sm:$0xf]
    %v350 = vld [vmem:[#allocation2 + $0x4a0] sm:$0xf]
    %v351 = vld [vmem:[#allocation2 + $0x4a4] sm:$0xf]
    %v352 = vld [vmem:[#allocation2 + $0x4a8] sm:$0xf]
    %v353 = vld [vmem:[#allocation2 + $0x4ac] sm:$0xf]
    %v354 = vld [vmem:[#allocation2 + $0x4b0] sm:$0xf]
    %v355 = vld [vmem:[#allocation2 + $0x4b4] sm:$0xf]
    %v356 = vld [vmem:[#allocation2 + $0x4b8] sm:$0xf]
    %v357 = vld [vmem:[#allocation2 + $0x4bc] sm:$0xf]
    %v358 = vld [vmem:[#allocation2 + $0x4c0] sm:$0xf]
    %v359 = vld [vmem:[#allocation2 + $0x4c4] sm:$0xf]
    %v360 = vld [vmem:[#allocation2 + $0x4c8] sm:$0xf]
    %v361 = vld [vmem:[#allocation2 + $0x4cc] sm:$0xf]
    %v362 = vld [vmem:[#allocation2 + $0x4d0] sm:$0xf]
    %v363 = vld [vmem:[#allocation2 + $0x4d4] sm:$0xf]
    %v364 = vld [vmem:[#allocation2 + $0x4d8] sm:$0xf]
    %v365 = vld [vmem:[#allocation2 + $0x4dc] sm:$0xf]
    %v366 = vld [vmem:[#allocation2 + $0x4e0] sm:$0xf]
    %v367 = vld [vmem:[#allocation2 + $0x4e4] sm:$0xf]
    %v368 = vld [vmem:[#allocation2 + $0x4e8] sm:$0xf]
    %v369 = vld [vmem:[#allocation2 + $0x4ec] sm:$0xf]
    %v370 = vld [vmem:[#allocation2 + $0x4f0] sm:$0xf]
    %v371 = vld [vmem:[#allocation2 + $0x4f4] sm:$0xf]
    %v372 = vld [vmem:[#allocation2 + $0x4f8] sm:$0xf]
    %v373 = vld [vmem:[#allocation2 + $0x4fc] sm:$0xf]
    %v374 = vld [vmem:[#allocation2 + $0x500] sm:$0xf]
    %v375 = vld [vmem:[#allocation2 + $0x504] sm:$0xf]
    %v376 = vld [vmem:[#allocation2 + $0x508] sm:$0xf]
    %v377 = vld [vmem:[#allocation2 + $0x50c] sm:$0xf]
    %v378 = vld [vmem:[#allocation2 + $0x510] sm:$0xf]
    %v379 = vld [vmem:[#allocation2 + $0x514] sm:$0xf]
    %v380 = vld [vmem:[#allocation2 + $0x518] sm:$0xf]
    %v381 = vld [vmem:[#allocation2 + $0x51c] sm:$0xf]
    %v382 = vld [vmem:[#allocation2 + $0x520] sm:$0xf]
    %v383 = vld [vmem:[#allocation2 + $0x524] sm:$0xf]
    %v384 = vld [vmem:[#allocation2 + $0x528] sm:$0xf]
    %v385 = vld [vmem:[#allocation2 + $0x52c] sm:$0xf]
    %v386 = vld [vmem:[#allocation2 + $0x530] sm:$0xf]
    %v387 = vld [vmem:[#allocation2 + $0x534] sm:$0xf]
    %v388 = vld [vmem:[#allocation2 + $0x538] sm:$0xf]
    %v389 = vld [vmem:[#allocation2 + $0x53c] sm:$0xf]
    %v390 = vld [vmem:[#allocation2 + $0x540] sm:$0xf]
    %v391 = vld [vmem:[#allocation2 + $0x544] sm:$0xf]
    %v392 = vld [vmem:[#allocation2 + $0x548] sm:$0xf]
    %v393 = vld [vmem:[#allocation2 + $0x54c] sm:$0xf]
    %v394 = vld [vmem:[#allocation2 + $0x550] sm:$0xf]
    %v395 = vld [vmem:[#allocation2 + $0x554] sm:$0xf]
    %v396 = vld [vmem:[#allocation2 + $0x558] sm:$0xf]
    %v397 = vld [vmem:[#allocation2 + $0x55c] sm:$0xf]
    %v398 = vld [vmem:[#allocation2 + $0x560] sm:$0xf]
    %v399 = vld [vmem:[#allocation2 + $0x564] sm:$0xf]
    %v400 = vld [vmem:[#allocation2 + $0x568] sm:$0xf]
    %v401 = vld [vmem:[#allocation2 + $0x56c] sm:$0xf]
    %v402 = vld [vmem:[#allocation2 + $0x570] sm:$0xf]
    %v403 = vld [vmem:[#allocation2 + $0x574] sm:$0xf]
    %v404 = vld [vmem:[#allocation2 + $0x578] sm:$0xf]
    %v405 = vld [vmem:[#allocation2 + $0x57c] sm:$0xf]
    %v406 = vld [vmem:[#allocation2 + $0x580] sm:$0xf]
    %v407 = vld [vmem:[#allocation2 + $0x584] sm:$0xf]
    %v408 = vld [vmem:[#allocation2 + $0x588] sm:$0xf]
    %v409 = vld [vmem:[#allocation2 + $0x58c] sm:$0xf]
    %v410 = vld [vmem:[#allocation2 + $0x590] sm:$0xf]
    %v411 = vld [vmem:[#allocation2 + $0x594] sm:$0xf]
    %v412 = vld [vmem:[#allocation2 + $0x598] sm:$0xf]
    %v413 = vld [vmem:[#allocation2 + $0x59c] sm:$0xf]
    %v414 = vld [vmem:[#allocation2 + $0x5a0] sm:$0xf]
    %v415 = vld [vmem:[#allocation2 + $0x5a4] sm:$0xf]
    %v416 = vld [vmem:[#allocation2 + $0x5a8] sm:$0xf]
    %v417 = vld [vmem:[#allocation2 + $0x5ac] sm:$0xf]
    %v418 = vld [vmem:[#allocation2 + $0x5b0] sm:$0xf]
    %v419 = vld [vmem:[#allocation2 + $0x5b4] sm:$0xf]
    %v420 = vld [vmem:[#allocation2 + $0x5b8] sm:$0xf]
    %v421 = vld [vmem:[#allocation2 + $0x5bc] sm:$0xf]
    %v422 = vld [vmem:[#allocation2 + $0x5c0] sm:$0xf]
    %v423 = vld [vmem:[#allocation2 + $0x5c4] sm:$0xf]
    %v424 = vld [vmem:[#allocation2 + $0x5c8] sm:$0xf]
    %v425 = vld [vmem:[#allocation2 + $0x5cc] sm:$0xf]
    %v426 = vld [vmem:[#allocation2 + $0x5d0] sm:$0xf]
    %v427 = vld [vmem:[#allocation2 + $0x5d4] sm:$0xf]
    %v428 = vld [vmem:[#allocation2 + $0x5d8] sm:$0xf]
    %v429 = vld [vmem:[#allocation2 + $0x5dc] sm:$0xf]
    %v430 = vld [vmem:[#allocation2 + $0x5e0] sm:$0xf]
    %v431 = vld [vmem:[#allocation2 + $0x5e4] sm:$0xf]
    %v432 = vld [vmem:[#allocation2 + $0x5e8] sm:$0xf]
    %v433 = vld [vmem:[#allocation2 + $0x5ec] sm:$0xf]
    %v434 = vld [vmem:[#allocation2 + $0x5f0] sm:$0xf]
    %v435 = vld [vmem:[#allocation2 + $0x5f4] sm:$0xf]
    %v436 = vld [vmem:[#allocation2 + $0x5f8] sm:$0xf]
    %v437 = vld [vmem:[#allocation2 + $0x5fc] sm:$0xf]
    %v438 = vld [vmem:[%s2] sm:$0x1]
    %v440 = vperm.slane %v438, 0
    %v466 = vunpack.c.l.b16 %v30
    %v467 = vunpack.c.h.b16 %v30
    %v468 = vunpack.c.l.b16 %v31
    %v469 = vunpack.c.h.b16 %v31
    %v470 = vunpack.c.l.b16 %v32
    %v471 = vunpack.c.h.b16 %v32
    %v472 = vunpack.c.l.b16 %v33
    %v473 = vunpack.c.h.b16 %v33
    %v474 = vunpack.c.l.b16 %v34
    %v475 = vunpack.c.h.b16 %v34
    %v476 = vunpack.c.l.b16 %v35
    %v477 = vunpack.c.h.b16 %v35
    %v478 = vunpack.c.l.b16 %v36
    %v479 = vunpack.c.h.b16 %v36
    %v480 = vunpack.c.l.b16 %v37
    %v481 = vunpack.c.h.b16 %v37
    %v482 = vunpack.c.l.b16 %v38
    %v483 = vunpack.c.h.b16 %v38
    %v484 = vunpack.c.l.b16 %v39
    %v485 = vunpack.c.h.b16 %v39
    %v486 = vunpack.c.l.b16 %v40
    %v487 = vunpack.c.h.b16 %v40
    %v488 = vunpack.c.l.b16 %v41
    %v489 = vunpack.c.h.b16 %v41
    %v490 = vunpack.c.l.b16 %v42
    %v491 = vunpack.c.h.b16 %v42
    %v492 = vunpack.c.l.b16 %v43
    %v493 = vunpack.c.h.b16 %v43
    %v494 = vunpack.c.l.b16 %v44
    %v495 = vunpack.c.h.b16 %v44
    %v496 = vunpack.c.l.b16 %v45
    %v497 = vunpack.c.h.b16 %v45
    %v498 = vunpack.c.l.b16 %v46
    %v499 = vunpack.c.h.b16 %v46
    %v500 = vunpack.c.l.b16 %v47
    %v501 = vunpack.c.h.b16 %v47
    %v502 = vunpack.c.l.b16 %v48
    %v503 = vunpack.c.h.b16 %v48
    %v504 = vunpack.c.l.b16 %v49
    %v505 = vunpack.c.h.b16 %v49
    %v506 = vunpack.c.l.b16 %v50
    %v507 = vunpack.c.h.b16 %v50
    %v508 = vunpack.c.l.b16 %v51
    %v509 = vunpack.c.h.b16 %v51
    %v510 = vunpack.c.l.b16 %v52
    %v511 = vunpack.c.h.b16 %v52
    %v512 = vunpack.c.l.b16 %v53
    %v513 = vunpack.c.h.b16 %v53
    %v514 = vpack.c.b16 %v490, %v466
    %v515 = vpack.c.b16 %v491, %v467
    %v516 = vpack.c.b16 %v492, %v468
    %v517 = vpack.c.b16 %v493, %v469
    %v518 = vpack.c.b16 %v494, %v470
    %v519 = vpack.c.b16 %v495, %v471
    %v520 = vpack.c.b16 %v496, %v472
    %v521 = vpack.c.b16 %v497, %v473
    %v522 = vpack.c.b16 %v498, %v474
    %v523 = vpack.c.b16 %v499, %v475
    %v524 = vpack.c.b16 %v500, %v476
    %v525 = vpack.c.b16 %v501, %v477
    %v526 = vpack.c.b16 %v502, %v478
    %v527 = vpack.c.b16 %v503, %v479
    %v528 = vpack.c.b16 %v504, %v480
    %v529 = vpack.c.b16 %v505, %v481
    %v530 = vpack.c.b16 %v506, %v482
    %v531 = vpack.c.b16 %v507, %v483
    %v532 = vpack.c.b16 %v508, %v484
    %v533 = vpack.c.b16 %v509, %v485
    %v534 = vpack.c.b16 %v510, %v486
    %v535 = vpack.c.b16 %v511, %v487
    %v536 = vpack.c.b16 %v512, %v488
    %v537 = vpack.c.b16 %v513, %v489
    %v946 = vunpack.c.l.b16 %v54
    %v947 = vunpack.c.l.b16 %v55
    %v948 = vunpack.c.l.b16 %v56
    %v949 = vunpack.c.l.b16 %v57
    %v950 = vunpack.c.l.b16 %v58
    %v951 = vunpack.c.l.b16 %v59
    %v952 = vunpack.c.l.b16 %v60
    %v953 = vunpack.c.l.b16 %v61
    %v954 = vunpack.c.l.b16 %v62
    %v955 = vunpack.c.l.b16 %v63
    %v956 = vunpack.c.l.b16 %v64
    %v957 = vunpack.c.l.b16 %v65
    %v958 = vunpack.c.l.b16 %v66
    %v959 = vunpack.c.l.b16 %v67
    %v960 = vunpack.c.l.b16 %v68
    %v961 = vunpack.c.l.b16 %v69
    %v962 = vunpack.c.l.b16 %v70
    %v963 = vunpack.c.l.b16 %v71
    %v964 = vunpack.c.l.b16 %v72
    %v965 = vunpack.c.l.b16 %v73
    %v966 = vunpack.c.l.b16 %v74
    %v967 = vunpack.c.l.b16 %v75
    %v968 = vunpack.c.l.b16 %v76
    %v969 = vunpack.c.l.b16 %v77
    %v970 = vunpack.c.l.b16 %v78
    %v971 = vunpack.c.l.b16 %v79
    %v972 = vunpack.c.l.b16 %v80
    %v973 = vunpack.c.l.b16 %v81
    %v974 = vunpack.c.l.b16 %v82
    %v975 = vunpack.c.l.b16 %v83
    %v976 = vunpack.c.l.b16 %v84
    %v977 = vunpack.c.l.b16 %v85
    %v978 = vunpack.c.l.b16 %v86
    %v979 = vunpack.c.l.b16 %v87
    %v980 = vunpack.c.l.b16 %v88
    %v981 = vunpack.c.l.b16 %v89
    %v982 = vunpack.c.l.b16 %v90
    %v983 = vunpack.c.l.b16 %v91
    %v984 = vunpack.c.l.b16 %v92
    %v985 = vunpack.c.l.b16 %v93
    %v986 = vunpack.c.l.b16 %v94
    %v987 = vunpack.c.l.b16 %v95
    %v988 = vunpack.c.l.b16 %v96
    %v989 = vunpack.c.l.b16 %v97
    %v990 = vunpack.c.l.b16 %v98
    %v991 = vunpack.c.l.b16 %v99
    %v992 = vunpack.c.l.b16 %v100
    %v993 = vunpack.c.l.b16 %v101
    %v994 = vunpack.c.l.b16 %v102
    %v995 = vunpack.c.l.b16 %v103
    %v996 = vunpack.c.l.b16 %v104
    %v997 = vunpack.c.l.b16 %v105
    %v998 = vunpack.c.l.b16 %v106
    %v999 = vunpack.c.l.b16 %v107
    %v1000 = vunpack.c.l.b16 %v108
    %v1001 = vunpack.c.l.b16 %v109
    %v1002 = vunpack.c.l.b16 %v110
    %v1003 = vunpack.c.l.b16 %v111
    %v1004 = vunpack.c.l.b16 %v112
    %v1005 = vunpack.c.l.b16 %v113
    %v1006 = vunpack.c.l.b16 %v114
    %v1007 = vunpack.c.l.b16 %v115
    %v1008 = vunpack.c.l.b16 %v116
    %v1009 = vunpack.c.l.b16 %v117
    %v1010 = vunpack.c.l.b16 %v118
    %v1011 = vunpack.c.l.b16 %v119
    %v1012 = vunpack.c.l.b16 %v120
    %v1013 = vunpack.c.l.b16 %v121
    %v1014 = vunpack.c.l.b16 %v122
    %v1015 = vunpack.c.l.b16 %v123
    %v1016 = vunpack.c.l.b16 %v124
    %v1017 = vunpack.c.l.b16 %v125
    %v1018 = vunpack.c.l.b16 %v126
    %v1019 = vunpack.c.l.b16 %v127
    %v1020 = vunpack.c.l.b16 %v128
    %v1021 = vunpack.c.l.b16 %v129
    %v1022 = vunpack.c.l.b16 %v130
    %v1023 = vunpack.c.l.b16 %v131
    %v1024 = vunpack.c.l.b16 %v132
    %v1025 = vunpack.c.l.b16 %v133
    %v1026 = vunpack.c.l.b16 %v134
    %v1027 = vunpack.c.l.b16 %v135
    %v1028 = vunpack.c.l.b16 %v136
    %v1029 = vunpack.c.l.b16 %v137
    %v1030 = vunpack.c.l.b16 %v138
    %v1031 = vunpack.c.l.b16 %v139
    %v1032 = vunpack.c.l.b16 %v140
    %v1033 = vunpack.c.l.b16 %v141
    %v1034 = vunpack.c.l.b16 %v142
    %v1035 = vunpack.c.l.b16 %v143
    %v1036 = vunpack.c.l.b16 %v144
    %v1037 = vunpack.c.l.b16 %v145
    %v1038 = vunpack.c.l.b16 %v146
    %v1039 = vunpack.c.l.b16 %v147
    %v1040 = vunpack.c.l.b16 %v148
    %v1041 = vunpack.c.l.b16 %v149
    %v1042 = vunpack.c.l.b16 %v150
    %v1043 = vunpack.c.l.b16 %v151
    %v1044 = vunpack.c.l.b16 %v152
    %v1045 = vunpack.c.l.b16 %v153
    %v1046 = vunpack.c.l.b16 %v154
    %v1047 = vunpack.c.l.b16 %v155
    %v1048 = vunpack.c.l.b16 %v156
    %v1049 = vunpack.c.l.b16 %v157
    %v1050 = vunpack.c.l.b16 %v158
    %v1051 = vunpack.c.l.b16 %v159
    %v1052 = vunpack.c.l.b16 %v160
    %v1053 = vunpack.c.l.b16 %v161
    %v1054 = vunpack.c.l.b16 %v162
    %v1055 = vunpack.c.l.b16 %v163
    %v1056 = vunpack.c.l.b16 %v164
    %v1057 = vunpack.c.l.b16 %v165
    %v1058 = vunpack.c.l.b16 %v166
    %v1059 = vunpack.c.l.b16 %v167
    %v1060 = vunpack.c.l.b16 %v168
    %v1061 = vunpack.c.l.b16 %v169
    %v1062 = vunpack.c.l.b16 %v170
    %v1063 = vunpack.c.l.b16 %v171
    %v1064 = vunpack.c.l.b16 %v172
    %v1065 = vunpack.c.l.b16 %v173
    %v1066 = vunpack.c.l.b16 %v174
    %v1067 = vunpack.c.l.b16 %v175
    %v1068 = vunpack.c.l.b16 %v176
    %v1069 = vunpack.c.l.b16 %v177
    %v1070 = vunpack.c.l.b16 %v178
    %v1071 = vunpack.c.l.b16 %v179
    %v1072 = vunpack.c.l.b16 %v180
    %v1073 = vunpack.c.l.b16 %v181
    %v1074 = vunpack.c.l.b16 %v182
    %v1075 = vunpack.c.l.b16 %v183
    %v1076 = vunpack.c.l.b16 %v184
    %v1077 = vunpack.c.l.b16 %v185
    %v1078 = vunpack.c.l.b16 %v186
    %v1079 = vunpack.c.l.b16 %v187
    %v1080 = vunpack.c.l.b16 %v188
    %v1081 = vunpack.c.l.b16 %v189
    %v1082 = vunpack.c.l.b16 %v190
    %v1083 = vunpack.c.l.b16 %v191
    %v1084 = vunpack.c.l.b16 %v192
    %v1085 = vunpack.c.l.b16 %v193
    %v1086 = vunpack.c.l.b16 %v194
    %v1087 = vunpack.c.l.b16 %v195
    %v1088 = vunpack.c.l.b16 %v196
    %v1089 = vunpack.c.l.b16 %v197
    %v1090 = vunpack.c.l.b16 %v198
    %v1091 = vunpack.c.l.b16 %v199
    %v1092 = vunpack.c.l.b16 %v200
    %v1093 = vunpack.c.l.b16 %v201
    %v1094 = vunpack.c.l.b16 %v202
    %v1095 = vunpack.c.l.b16 %v203
    %v1096 = vunpack.c.l.b16 %v204
    %v1097 = vunpack.c.l.b16 %v205
    %v1098 = vunpack.c.l.b16 %v206
    %v1099 = vunpack.c.l.b16 %v207
    %v1100 = vunpack.c.l.b16 %v208
    %v1101 = vunpack.c.l.b16 %v209
    %v1102 = vunpack.c.l.b16 %v210
    %v1103 = vunpack.c.l.b16 %v211
    %v1104 = vunpack.c.l.b16 %v212
    %v1105 = vunpack.c.l.b16 %v213
    %v1106 = vunpack.c.l.b16 %v214
    %v1107 = vunpack.c.l.b16 %v215
    %v1108 = vunpack.c.l.b16 %v216
    %v1109 = vunpack.c.l.b16 %v217
    %v1110 = vunpack.c.l.b16 %v218
    %v1111 = vunpack.c.l.b16 %v219
    %v1112 = vunpack.c.l.b16 %v220
    %v1113 = vunpack.c.l.b16 %v221
    %v1114 = vunpack.c.l.b16 %v222
    %v1115 = vunpack.c.l.b16 %v223
    %v1116 = vunpack.c.l.b16 %v224
    %v1117 = vunpack.c.l.b16 %v225
    %v1118 = vunpack.c.l.b16 %v226
    %v1119 = vunpack.c.l.b16 %v227
    %v1120 = vunpack.c.l.b16 %v228
    %v1121 = vunpack.c.l.b16 %v229
    %v1122 = vunpack.c.l.b16 %v230
    %v1123 = vunpack.c.l.b16 %v231
    %v1124 = vunpack.c.l.b16 %v232
    %v1125 = vunpack.c.l.b16 %v233
    %v1126 = vunpack.c.l.b16 %v234
    %v1127 = vunpack.c.l.b16 %v235
    %v1128 = vunpack.c.l.b16 %v236
    %v1129 = vunpack.c.l.b16 %v237
    %v1130 = vunpack.c.l.b16 %v238
    %v1131 = vunpack.c.l.b16 %v239
    %v1132 = vunpack.c.l.b16 %v240
    %v1133 = vunpack.c.l.b16 %v241
    %v1134 = vunpack.c.l.b16 %v242
    %v1135 = vunpack.c.l.b16 %v243
    %v1136 = vunpack.c.l.b16 %v244
    %v1137 = vunpack.c.l.b16 %v245
    %v1138 = vunpack.c.l.b16 %v246
    %v1139 = vunpack.c.l.b16 %v247
    %v1140 = vunpack.c.l.b16 %v248
    %v1141 = vunpack.c.l.b16 %v249
    %v1142 = vunpack.c.l.b16 %v250
    %v1143 = vunpack.c.l.b16 %v251
    %v1144 = vunpack.c.l.b16 %v252
    %v1145 = vunpack.c.l.b16 %v253
    %v1146 = vunpack.c.l.b16 %v254
    %v1147 = vunpack.c.l.b16 %v255
    %v1148 = vunpack.c.l.b16 %v256
    %v1149 = vunpack.c.l.b16 %v257
    %v1150 = vunpack.c.l.b16 %v258
    %v1151 = vunpack.c.l.b16 %v259
    %v1152 = vunpack.c.l.b16 %v260
    %v1153 = vunpack.c.l.b16 %v261
    %v1154 = vunpack.c.l.b16 %v262
    %v1155 = vunpack.c.l.b16 %v263
    %v1156 = vunpack.c.l.b16 %v264
    %v1157 = vunpack.c.l.b16 %v265
    %v1158 = vunpack.c.l.b16 %v266
    %v1159 = vunpack.c.l.b16 %v267
    %v1160 = vunpack.c.l.b16 %v268
    %v1161 = vunpack.c.l.b16 %v269
    %v1162 = vunpack.c.l.b16 %v270
    %v1163 = vunpack.c.l.b16 %v271
    %v1164 = vunpack.c.l.b16 %v272
    %v1165 = vunpack.c.l.b16 %v273
    %v1166 = vunpack.c.l.b16 %v274
    %v1167 = vunpack.c.l.b16 %v275
    %v1168 = vunpack.c.l.b16 %v276
    %v1169 = vunpack.c.l.b16 %v277
    %v1170 = vunpack.c.l.b16 %v278
    %v1171 = vunpack.c.l.b16 %v279
    %v1172 = vunpack.c.l.b16 %v280
    %v1173 = vunpack.c.l.b16 %v281
    %v1174 = vunpack.c.l.b16 %v282
    %v1175 = vunpack.c.l.b16 %v283
    %v1176 = vunpack.c.l.b16 %v284
    %v1177 = vunpack.c.l.b16 %v285
    %v1178 = vunpack.c.l.b16 %v286
    %v1179 = vunpack.c.l.b16 %v287
    %v1180 = vunpack.c.l.b16 %v288
    %v1181 = vunpack.c.l.b16 %v289
    %v1182 = vunpack.c.l.b16 %v290
    %v1183 = vunpack.c.l.b16 %v291
    %v1184 = vunpack.c.l.b16 %v292
    %v1185 = vunpack.c.l.b16 %v293
    %v1186 = vunpack.c.l.b16 %v294
    %v1187 = vunpack.c.l.b16 %v295
    %v1188 = vunpack.c.l.b16 %v296
    %v1189 = vunpack.c.l.b16 %v297
    %v1190 = vunpack.c.l.b16 %v298
    %v1191 = vunpack.c.l.b16 %v299
    %v1192 = vunpack.c.l.b16 %v300
    %v1193 = vunpack.c.l.b16 %v301
    %v1194 = vunpack.c.l.b16 %v302
    %v1195 = vunpack.c.l.b16 %v303
    %v1196 = vunpack.c.l.b16 %v304
    %v1197 = vunpack.c.l.b16 %v305
    %v1198 = vunpack.c.l.b16 %v306
    %v1199 = vunpack.c.l.b16 %v307
    %v1200 = vunpack.c.l.b16 %v308
    %v1201 = vunpack.c.l.b16 %v309
    %v1202 = vunpack.c.l.b16 %v310
    %v1203 = vunpack.c.l.b16 %v311
    %v1204 = vunpack.c.l.b16 %v312
    %v1205 = vunpack.c.l.b16 %v313
    %v1206 = vunpack.c.l.b16 %v314
    %v1207 = vunpack.c.l.b16 %v315
    %v1208 = vunpack.c.l.b16 %v316
    %v1209 = vunpack.c.l.b16 %v317
    %v1210 = vunpack.c.l.b16 %v318
    %v1211 = vunpack.c.l.b16 %v319
    %v1212 = vunpack.c.l.b16 %v320
    %v1213 = vunpack.c.l.b16 %v321
    %v1214 = vunpack.c.l.b16 %v322
    %v1215 = vunpack.c.l.b16 %v323
    %v1216 = vunpack.c.l.b16 %v324
    %v1217 = vunpack.c.l.b16 %v325
    %v1218 = vunpack.c.l.b16 %v326
    %v1219 = vunpack.c.l.b16 %v327
    %v1220 = vunpack.c.l.b16 %v328
    %v1221 = vunpack.c.l.b16 %v329
    %v1222 = vunpack.c.l.b16 %v330
    %v1223 = vunpack.c.l.b16 %v331
    %v1224 = vunpack.c.l.b16 %v332
    %v1225 = vunpack.c.l.b16 %v333
    %v1226 = vunpack.c.l.b16 %v334
    %v1227 = vunpack.c.l.b16 %v335
    %v1228 = vunpack.c.l.b16 %v336
    %v1229 = vunpack.c.l.b16 %v337
    %v1230 = vunpack.c.l.b16 %v338
    %v1231 = vunpack.c.l.b16 %v339
    %v1232 = vunpack.c.l.b16 %v340
    %v1233 = vunpack.c.l.b16 %v341
    %v1234 = vunpack.c.l.b16 %v342
    %v1235 = vunpack.c.l.b16 %v343
    %v1236 = vunpack.c.l.b16 %v344
    %v1237 = vunpack.c.l.b16 %v345
    %v1238 = vunpack.c.l.b16 %v346
    %v1239 = vunpack.c.l.b16 %v347
    %v1240 = vunpack.c.l.b16 %v348
    %v1241 = vunpack.c.l.b16 %v349
    %v1242 = vunpack.c.l.b16 %v350
    %v1243 = vunpack.c.l.b16 %v351
    %v1244 = vunpack.c.l.b16 %v352
    %v1245 = vunpack.c.l.b16 %v353
    %v1246 = vunpack.c.l.b16 %v354
    %v1247 = vunpack.c.l.b16 %v355
    %v1248 = vunpack.c.l.b16 %v356
    %v1249 = vunpack.c.l.b16 %v357
    %v1250 = vunpack.c.l.b16 %v358
    %v1251 = vunpack.c.l.b16 %v359
    %v1252 = vunpack.c.l.b16 %v360
    %v1253 = vunpack.c.l.b16 %v361
    %v1254 = vunpack.c.l.b16 %v362
    %v1255 = vunpack.c.l.b16 %v363
    %v1256 = vunpack.c.l.b16 %v364
    %v1257 = vunpack.c.l.b16 %v365
    %v1258 = vunpack.c.l.b16 %v366
    %v1259 = vunpack.c.l.b16 %v367
    %v1260 = vunpack.c.l.b16 %v368
    %v1261 = vunpack.c.l.b16 %v369
    %v1262 = vunpack.c.l.b16 %v370
    %v1263 = vunpack.c.l.b16 %v371
    %v1264 = vunpack.c.l.b16 %v372
    %v1265 = vunpack.c.l.b16 %v373
    %v1266 = vunpack.c.l.b16 %v374
    %v1267 = vunpack.c.l.b16 %v375
    %v1268 = vunpack.c.l.b16 %v376
    %v1269 = vunpack.c.l.b16 %v377
    %v1270 = vunpack.c.l.b16 %v378
    %v1271 = vunpack.c.l.b16 %v379
    %v1272 = vunpack.c.l.b16 %v380
    %v1273 = vunpack.c.l.b16 %v381
    %v1274 = vunpack.c.l.b16 %v382
    %v1275 = vunpack.c.l.b16 %v383
    %v1276 = vunpack.c.l.b16 %v384
    %v1277 = vunpack.c.l.b16 %v385
    %v1278 = vunpack.c.l.b16 %v386
    %v1279 = vunpack.c.l.b16 %v387
    %v1280 = vunpack.c.l.b16 %v388
    %v1281 = vunpack.c.l.b16 %v389
    %v1282 = vunpack.c.l.b16 %v390
    %v1283 = vunpack.c.l.b16 %v391
    %v1284 = vunpack.c.l.b16 %v392
    %v1285 = vunpack.c.l.b16 %v393
    %v1286 = vunpack.c.l.b16 %v394
    %v1287 = vunpack.c.l.b16 %v395
    %v1288 = vunpack.c.l.b16 %v396
    %v1289 = vunpack.c.l.b16 %v397
    %v1290 = vunpack.c.l.b16 %v398
    %v1291 = vunpack.c.l.b16 %v399
    %v1292 = vunpack.c.l.b16 %v400
    %v1293 = vunpack.c.l.b16 %v401
    %v1294 = vunpack.c.l.b16 %v402
    %v1295 = vunpack.c.l.b16 %v403
    %v1296 = vunpack.c.l.b16 %v404
    %v1297 = vunpack.c.l.b16 %v405
    %v1298 = vunpack.c.l.b16 %v406
    %v1299 = vunpack.c.l.b16 %v407
    %v1300 = vunpack.c.l.b16 %v408
    %v1301 = vunpack.c.l.b16 %v409
    %v1302 = vunpack.c.l.b16 %v410
    %v1303 = vunpack.c.l.b16 %v411
    %v1304 = vunpack.c.l.b16 %v412
    %v1305 = vunpack.c.l.b16 %v413
    %v1306 = vunpack.c.l.b16 %v414
    %v1307 = vunpack.c.l.b16 %v415
    %v1308 = vunpack.c.l.b16 %v416
    %v1309 = vunpack.c.l.b16 %v417
    %v1310 = vunpack.c.l.b16 %v418
    %v1311 = vunpack.c.l.b16 %v419
    %v1312 = vunpack.c.l.b16 %v420
    %v1313 = vunpack.c.l.b16 %v421
    %v1314 = vunpack.c.l.b16 %v422
    %v1315 = vunpack.c.l.b16 %v423
    %v1316 = vunpack.c.l.b16 %v424
    %v1317 = vunpack.c.l.b16 %v425
    %v1318 = vunpack.c.l.b16 %v426
    %v1319 = vunpack.c.l.b16 %v427
    %v1320 = vunpack.c.l.b16 %v428
    %v1321 = vunpack.c.l.b16 %v429
    %v1322 = vunpack.c.l.b16 %v430
    %v1323 = vunpack.c.l.b16 %v431
    %v1324 = vunpack.c.l.b16 %v432
    %v1325 = vunpack.c.l.b16 %v433
    %v1326 = vunpack.c.l.b16 %v434
    %v1327 = vunpack.c.l.b16 %v435
    %v1328 = vunpack.c.l.b16 %v436
    %v1329 = vunpack.c.l.b16 %v437
    %v1330 = vpack.c.b16 %v947, %v946
    %v1331 = vpack.c.b16 %v949, %v948
    %v1332 = vpack.c.b16 %v951, %v950
    %v1333 = vpack.c.b16 %v953, %v952
    %v1334 = vpack.c.b16 %v955, %v954
    %v1335 = vpack.c.b16 %v957, %v956
    %v1336 = vpack.c.b16 %v959, %v958
    %v1337 = vpack.c.b16 %v961, %v960
    %v1338 = vpack.c.b16 %v963, %v962
    %v1339 = vpack.c.b16 %v965, %v964
    %v1340 = vpack.c.b16 %v967, %v966
    %v1341 = vpack.c.b16 %v969, %v968
    %v1342 = vpack.c.b16 %v971, %v970
    %v1343 = vpack.c.b16 %v973, %v972
    %v1344 = vpack.c.b16 %v975, %v974
    %v1345 = vpack.c.b16 %v977, %v976
    %v1346 = vpack.c.b16 %v979, %v978
    %v1347 = vpack.c.b16 %v981, %v980
    %v1348 = vpack.c.b16 %v983, %v982
    %v1349 = vpack.c.b16 %v985, %v984
    %v1350 = vpack.c.b16 %v987, %v986
    %v1351 = vpack.c.b16 %v989, %v988
    %v1352 = vpack.c.b16 %v991, %v990
    %v1353 = vpack.c.b16 %v993, %v992
    %v1354 = vpack.c.b16 %v995, %v994
    %v1355 = vpack.c.b16 %v997, %v996
    %v1356 = vpack.c.b16 %v999, %v998
    %v1357 = vpack.c.b16 %v1001, %v1000
    %v1358 = vpack.c.b16 %v1003, %v1002
    %v1359 = vpack.c.b16 %v1005, %v1004
    %v1360 = vpack.c.b16 %v1007, %v1006
    %v1361 = vpack.c.b16 %v1009, %v1008
    %v1362 = vpack.c.b16 %v1011, %v1010
    %v1363 = vpack.c.b16 %v1013, %v1012
    %v1364 = vpack.c.b16 %v1015, %v1014
    %v1365 = vpack.c.b16 %v1017, %v1016
    %v1366 = vpack.c.b16 %v1019, %v1018
    %v1367 = vpack.c.b16 %v1021, %v1020
    %v1368 = vpack.c.b16 %v1023, %v1022
    %v1369 = vpack.c.b16 %v1025, %v1024
    %v1370 = vpack.c.b16 %v1027, %v1026
    %v1371 = vpack.c.b16 %v1029, %v1028
    %v1372 = vpack.c.b16 %v1031, %v1030
    %v1373 = vpack.c.b16 %v1033, %v1032
    %v1374 = vpack.c.b16 %v1035, %v1034
    %v1375 = vpack.c.b16 %v1037, %v1036
    %v1376 = vpack.c.b16 %v1039, %v1038
    %v1377 = vpack.c.b16 %v1041, %v1040
    %v1378 = vpack.c.b16 %v1043, %v1042
    %v1379 = vpack.c.b16 %v1045, %v1044
    %v1380 = vpack.c.b16 %v1047, %v1046
    %v1381 = vpack.c.b16 %v1049, %v1048
    %v1382 = vpack.c.b16 %v1051, %v1050
    %v1383 = vpack.c.b16 %v1053, %v1052
    %v1384 = vpack.c.b16 %v1055, %v1054
    %v1385 = vpack.c.b16 %v1057, %v1056
    %v1386 = vpack.c.b16 %v1059, %v1058
    %v1387 = vpack.c.b16 %v1061, %v1060
    %v1388 = vpack.c.b16 %v1063, %v1062
    %v1389 = vpack.c.b16 %v1065, %v1064
    %v1390 = vpack.c.b16 %v1067, %v1066
    %v1391 = vpack.c.b16 %v1069, %v1068
    %v1392 = vpack.c.b16 %v1071, %v1070
    %v1393 = vpack.c.b16 %v1073, %v1072
    %v1394 = vpack.c.b16 %v1075, %v1074
    %v1395 = vpack.c.b16 %v1077, %v1076
    %v1396 = vpack.c.b16 %v1079, %v1078
    %v1397 = vpack.c.b16 %v1081, %v1080
    %v1398 = vpack.c.b16 %v1083, %v1082
    %v1399 = vpack.c.b16 %v1085, %v1084
    %v1400 = vpack.c.b16 %v1087, %v1086
    %v1401 = vpack.c.b16 %v1089, %v1088
    %v1402 = vpack.c.b16 %v1091, %v1090
    %v1403 = vpack.c.b16 %v1093, %v1092
    %v1404 = vpack.c.b16 %v1095, %v1094
    %v1405 = vpack.c.b16 %v1097, %v1096
    %v1406 = vpack.c.b16 %v1099, %v1098
    %v1407 = vpack.c.b16 %v1101, %v1100
    %v1408 = vpack.c.b16 %v1103, %v1102
    %v1409 = vpack.c.b16 %v1105, %v1104
    %v1410 = vpack.c.b16 %v1107, %v1106
    %v1411 = vpack.c.b16 %v1109, %v1108
    %v1412 = vpack.c.b16 %v1111, %v1110
    %v1413 = vpack.c.b16 %v1113, %v1112
    %v1414 = vpack.c.b16 %v1115, %v1114
    %v1415 = vpack.c.b16 %v1117, %v1116
    %v1416 = vpack.c.b16 %v1119, %v1118
    %v1417 = vpack.c.b16 %v1121, %v1120
    %v1418 = vpack.c.b16 %v1123, %v1122
    %v1419 = vpack.c.b16 %v1125, %v1124
    %v1420 = vpack.c.b16 %v1127, %v1126
    %v1421 = vpack.c.b16 %v1129, %v1128
    %v1422 = vpack.c.b16 %v1131, %v1130
    %v1423 = vpack.c.b16 %v1133, %v1132
    %v1424 = vpack.c.b16 %v1135, %v1134
    %v1425 = vpack.c.b16 %v1137, %v1136
    %v1426 = vpack.c.b16 %v1139, %v1138
    %v1427 = vpack.c.b16 %v1141, %v1140
    %v1428 = vpack.c.b16 %v1143, %v1142
    %v1429 = vpack.c.b16 %v1145, %v1144
    %v1430 = vpack.c.b16 %v1147, %v1146
    %v1431 = vpack.c.b16 %v1149, %v1148
    %v1432 = vpack.c.b16 %v1151, %v1150
    %v1433 = vpack.c.b16 %v1153, %v1152
    %v1434 = vpack.c.b16 %v1155, %v1154
    %v1435 = vpack.c.b16 %v1157, %v1156
    %v1436 = vpack.c.b16 %v1159, %v1158
    %v1437 = vpack.c.b16 %v1161, %v1160
    %v1438 = vpack.c.b16 %v1163, %v1162
    %v1439 = vpack.c.b16 %v1165, %v1164
    %v1440 = vpack.c.b16 %v1167, %v1166
    %v1441 = vpack.c.b16 %v1169, %v1168
    %v1442 = vpack.c.b16 %v1171, %v1170
    %v1443 = vpack.c.b16 %v1173, %v1172
    %v1444 = vpack.c.b16 %v1175, %v1174
    %v1445 = vpack.c.b16 %v1177, %v1176
    %v1446 = vpack.c.b16 %v1179, %v1178
    %v1447 = vpack.c.b16 %v1181, %v1180
    %v1448 = vpack.c.b16 %v1183, %v1182
    %v1449 = vpack.c.b16 %v1185, %v1184
    %v1450 = vpack.c.b16 %v1187, %v1186
    %v1451 = vpack.c.b16 %v1189, %v1188
    %v1452 = vpack.c.b16 %v1191, %v1190
    %v1453 = vpack.c.b16 %v1193, %v1192
    %v1454 = vpack.c.b16 %v1195, %v1194
    %v1455 = vpack.c.b16 %v1197, %v1196
    %v1456 = vpack.c.b16 %v1199, %v1198
    %v1457 = vpack.c.b16 %v1201, %v1200
    %v1458 = vpack.c.b16 %v1203, %v1202
    %v1459 = vpack.c.b16 %v1205, %v1204
    %v1460 = vpack.c.b16 %v1207, %v1206
    %v1461 = vpack.c.b16 %v1209, %v1208
    %v1462 = vpack.c.b16 %v1211, %v1210
    %v1463 = vpack.c.b16 %v1213, %v1212
    %v1464 = vpack.c.b16 %v1215, %v1214
    %v1465 = vpack.c.b16 %v1217, %v1216
    %v1466 = vpack.c.b16 %v1219, %v1218
    %v1467 = vpack.c.b16 %v1221, %v1220
    %v1468 = vpack.c.b16 %v1223, %v1222
    %v1469 = vpack.c.b16 %v1225, %v1224
    %v1470 = vpack.c.b16 %v1227, %v1226
    %v1471 = vpack.c.b16 %v1229, %v1228
    %v1472 = vpack.c.b16 %v1231, %v1230
    %v1473 = vpack.c.b16 %v1233, %v1232
    %v1474 = vpack.c.b16 %v1235, %v1234
    %v1475 = vpack.c.b16 %v1237, %v1236
    %v1476 = vpack.c.b16 %v1239, %v1238
    %v1477 = vpack.c.b16 %v1241, %v1240
    %v1478 = vpack.c.b16 %v1243, %v1242
    %v1479 = vpack.c.b16 %v1245, %v1244
    %v1480 = vpack.c.b16 %v1247, %v1246
    %v1481 = vpack.c.b16 %v1249, %v1248
    %v1482 = vpack.c.b16 %v1251, %v1250
    %v1483 = vpack.c.b16 %v1253, %v1252
    %v1484 = vpack.c.b16 %v1255, %v1254
    %v1485 = vpack.c.b16 %v1257, %v1256
    %v1486 = vpack.c.b16 %v1259, %v1258
    %v1487 = vpack.c.b16 %v1261, %v1260
    %v1488 = vpack.c.b16 %v1263, %v1262
    %v1489 = vpack.c.b16 %v1265, %v1264
    %v1490 = vpack.c.b16 %v1267, %v1266
    %v1491 = vpack.c.b16 %v1269, %v1268
    %v1492 = vpack.c.b16 %v1271, %v1270
    %v1493 = vpack.c.b16 %v1273, %v1272
    %v1494 = vpack.c.b16 %v1275, %v1274
    %v1495 = vpack.c.b16 %v1277, %v1276
    %v1496 = vpack.c.b16 %v1279, %v1278
    %v1497 = vpack.c.b16 %v1281, %v1280
    %v1498 = vpack.c.b16 %v1283, %v1282
    %v1499 = vpack.c.b16 %v1285, %v1284
    %v1500 = vpack.c.b16 %v1287, %v1286
    %v1501 = vpack.c.b16 %v1289, %v1288
    %v1502 = vpack.c.b16 %v1291, %v1290
    %v1503 = vpack.c.b16 %v1293, %v1292
    %v1504 = vpack.c.b16 %v1295, %v1294
    %v1505 = vpack.c.b16 %v1297, %v1296
    %v1506 = vpack.c.b16 %v1299, %v1298
    %v1507 = vpack.c.b16 %v1301, %v1300
    %v1508 = vpack.c.b16 %v1303, %v1302
    %v1509 = vpack.c.b16 %v1305, %v1304
    %v1510 = vpack.c.b16 %v1307, %v1306
    %v1511 = vpack.c.b16 %v1309, %v1308
    %v1512 = vpack.c.b16 %v1311, %v1310
    %v1513 = vpack.c.b16 %v1313, %v1312
    %v1514 = vpack.c.b16 %v1315, %v1314
    %v1515 = vpack.c.b16 %v1317, %v1316
    %v1516 = vpack.c.b16 %v1319, %v1318
    %v1517 = vpack.c.b16 %v1321, %v1320
    %v1518 = vpack.c.b16 %v1323, %v1322
    %v1519 = vpack.c.b16 %v1325, %v1324
    %v1520 = vpack.c.b16 %v1327, %v1326
    %v1521 = vpack.c.b16 %v1329, %v1328
    %1714 = vmatpush.bf16.msra.mxu0 %v1337
    %1715 = vmatpush.bf16.msra.mxu0 %v1336
    %1716 = vmatpush.bf16.msra.mxu0 %v1335
    %1717 = vmatpush.bf16.msra.mxu0 %v1334
    %1718 = vmatpush.bf16.msra.mxu0 %v1333
    %1719 = vmatpush.bf16.msra.mxu0 %v1332
    %1720 = vmatpush.bf16.msra.mxu0 %v1331
    %1721 = vmatpush.bf16.msra.mxu0 %v1330
    %1722 = vmatmul.bf16.gmra.mxu0 %v514
    %v1723 = vpop.f32.mrf.mxu0
    %v1724 = vadd.f32 %v440, %v1723
    %v1725 = vpop.f32.mrf.mxu0
    %v1726 = vadd.f32 %v440, %v1725
    %1727 = vdwg.mxu0
    %1728 = vmatpush.bf16.msra.mxu0 %v1345
    %1729 = vmatpush.bf16.msra.mxu0 %v1344
    %1730 = vmatpush.bf16.msra.mxu0 %v1343
    %1731 = vmatpush.bf16.msra.mxu0 %v1342
    %1732 = vmatpush.bf16.msra.mxu0 %v1341
    %1733 = vmatpush.bf16.msra.mxu0 %v1340
    %1734 = vmatpush.bf16.msra.mxu0 %v1339
    %1735 = vmatpush.bf16.msra.mxu0 %v1338
    %1736 = vmatmul.bf16.gmra.mxu0 %v515
    %v1737 = vpop.f32.mrf.mxu0
    %v1738 = vadd.f32 %v1724, %v1737
    %v1739 = vpop.f32.mrf.mxu0
    %v1740 = vadd.f32 %v1726, %v1739
    %1741 = vdwg.mxu0
    %1742 = vmatpush.bf16.msra.mxu0 %v1353
    %1743 = vmatpush.bf16.msra.mxu0 %v1352
    %1744 = vmatpush.bf16.msra.mxu0 %v1351
    %1745 = vmatpush.bf16.msra.mxu0 %v1350
    %1746 = vmatpush.bf16.msra.mxu0 %v1349
    %1747 = vmatpush.bf16.msra.mxu0 %v1348
    %1748 = vmatpush.bf16.msra.mxu0 %v1347
    %1749 = vmatpush.bf16.msra.mxu0 %v1346
    %1750 = vmatmul.bf16.gmra.mxu0 %v516
    %v1751 = vpop.f32.mrf.mxu0
    %v1752 = vadd.f32 %v1738, %v1751
    %v1753 = vpop.f32.mrf.mxu0
    %v1754 = vadd.f32 %v1740, %v1753
    %1755 = vdwg.mxu0
    %1756 = vmatpush.bf16.msra.mxu0 %v1361
    %1757 = vmatpush.bf16.msra.mxu0 %v1360
    %1758 = vmatpush.bf16.msra.mxu0 %v1359
    %1759 = vmatpush.bf16.msra.mxu0 %v1358
    %1760 = vmatpush.bf16.msra.mxu0 %v1357
    %1761 = vmatpush.bf16.msra.mxu0 %v1356
    %1762 = vmatpush.bf16.msra.mxu0 %v1355
    %1763 = vmatpush.bf16.msra.mxu0 %v1354
    %1764 = vmatmul.bf16.gmra.mxu0 %v517
    %v1765 = vpop.f32.mrf.mxu0
    %v1766 = vadd.f32 %v1752, %v1765
    %v1767 = vpop.f32.mrf.mxu0
    %v1768 = vadd.f32 %v1754, %v1767
    %1769 = vdwg.mxu0
    %1770 = vmatpush.bf16.msra.mxu0 %v1369
    %1771 = vmatpush.bf16.msra.mxu0 %v1368
    %1772 = vmatpush.bf16.msra.mxu0 %v1367
    %1773 = vmatpush.bf16.msra.mxu0 %v1366
    %1774 = vmatpush.bf16.msra.mxu0 %v1365
    %1775 = vmatpush.bf16.msra.mxu0 %v1364
    %1776 = vmatpush.bf16.msra.mxu0 %v1363
    %1777 = vmatpush.bf16.msra.mxu0 %v1362
    %1778 = vmatmul.bf16.gmra.mxu0 %v518
    %v1779 = vpop.f32.mrf.mxu0
    %v1780 = vadd.f32 %v1766, %v1779
    %v1781 = vpop.f32.mrf.mxu0
    %v1782 = vadd.f32 %v1768, %v1781
    %1783 = vdwg.mxu0
    %1784 = vmatpush.bf16.msra.mxu0 %v1377
    %1785 = vmatpush.bf16.msra.mxu0 %v1376
    %1786 = vmatpush.bf16.msra.mxu0 %v1375
    %1787 = vmatpush.bf16.msra.mxu0 %v1374
    %1788 = vmatpush.bf16.msra.mxu0 %v1373
    %1789 = vmatpush.bf16.msra.mxu0 %v1372
    %1790 = vmatpush.bf16.msra.mxu0 %v1371
    %1791 = vmatpush.bf16.msra.mxu0 %v1370
    %1792 = vmatmul.bf16.gmra.mxu0 %v519
    %v1793 = vpop.f32.mrf.mxu0
    %v1794 = vadd.f32 %v1780, %v1793
    %v1795 = vpop.f32.mrf.mxu0
    %v1796 = vadd.f32 %v1782, %v1795
    %1797 = vdwg.mxu0
    %1798 = vmatpush.bf16.msra.mxu0 %v1385
    %1799 = vmatpush.bf16.msra.mxu0 %v1384
    %1800 = vmatpush.bf16.msra.mxu0 %v1383
    %1801 = vmatpush.bf16.msra.mxu0 %v1382
    %1802 = vmatpush.bf16.msra.mxu0 %v1381
    %1803 = vmatpush.bf16.msra.mxu0 %v1380
    %1804 = vmatpush.bf16.msra.mxu0 %v1379
    %1805 = vmatpush.bf16.msra.mxu0 %v1378
    %1806 = vmatmul.bf16.gmra.mxu0 %v520
    %v1807 = vpop.f32.mrf.mxu0
    %v1808 = vadd.f32 %v1794, %v1807
    %v1809 = vpop.f32.mrf.mxu0
    %v1810 = vadd.f32 %v1796, %v1809
    %1811 = vdwg.mxu0
    %1812 = vmatpush.bf16.msra.mxu0 %v1393
    %1813 = vmatpush.bf16.msra.mxu0 %v1392
    %1814 = vmatpush.bf16.msra.mxu0 %v1391
    %1815 = vmatpush.bf16.msra.mxu0 %v1390
    %1816 = vmatpush.bf16.msra.mxu0 %v1389
    %1817 = vmatpush.bf16.msra.mxu0 %v1388
    %1818 = vmatpush.bf16.msra.mxu0 %v1387
    %1819 = vmatpush.bf16.msra.mxu0 %v1386
    %1820 = vmatmul.bf16.gmra.mxu0 %v521
    %v1821 = vpop.f32.mrf.mxu0
    %v1822 = vadd.f32 %v1808, %v1821
    %v1823 = vpop.f32.mrf.mxu0
    %v1824 = vadd.f32 %v1810, %v1823
    %1825 = vdwg.mxu0
    %1826 = vmatpush.bf16.msra.mxu0 %v1401
    %1827 = vmatpush.bf16.msra.mxu0 %v1400
    %1828 = vmatpush.bf16.msra.mxu0 %v1399
    %1829 = vmatpush.bf16.msra.mxu0 %v1398
    %1830 = vmatpush.bf16.msra.mxu0 %v1397
    %1831 = vmatpush.bf16.msra.mxu0 %v1396
    %1832 = vmatpush.bf16.msra.mxu0 %v1395
    %1833 = vmatpush.bf16.msra.mxu0 %v1394
    %1834 = vmatmul.bf16.gmra.mxu0 %v522
    %v1835 = vpop.f32.mrf.mxu0
    %v1836 = vadd.f32 %v1822, %v1835
    %v1837 = vpop.f32.mrf.mxu0
    %v1838 = vadd.f32 %v1824, %v1837
    %1839 = vdwg.mxu0
    %1840 = vmatpush.bf16.msra.mxu0 %v1409
    %1841 = vmatpush.bf16.msra.mxu0 %v1408
    %1842 = vmatpush.bf16.msra.mxu0 %v1407
    %1843 = vmatpush.bf16.msra.mxu0 %v1406
    %1844 = vmatpush.bf16.msra.mxu0 %v1405
    %1845 = vmatpush.bf16.msra.mxu0 %v1404
    %1846 = vmatpush.bf16.msra.mxu0 %v1403
    %1847 = vmatpush.bf16.msra.mxu0 %v1402
    %1848 = vmatmul.bf16.gmra.mxu0 %v523
    %v1849 = vpop.f32.mrf.mxu0
    %v1850 = vadd.f32 %v1836, %v1849
    %v1851 = vpop.f32.mrf.mxu0
    %v1852 = vadd.f32 %v1838, %v1851
    %1853 = vdwg.mxu0
    %1854 = vmatpush.bf16.msra.mxu0 %v1417
    %1855 = vmatpush.bf16.msra.mxu0 %v1416
    %1856 = vmatpush.bf16.msra.mxu0 %v1415
    %1857 = vmatpush.bf16.msra.mxu0 %v1414
    %1858 = vmatpush.bf16.msra.mxu0 %v1413
    %1859 = vmatpush.bf16.msra.mxu0 %v1412
    %1860 = vmatpush.bf16.msra.mxu0 %v1411
    %1861 = vmatpush.bf16.msra.mxu0 %v1410
    %1862 = vmatmul.bf16.gmra.mxu0 %v524
    %v1863 = vpop.f32.mrf.mxu0
    %v1864 = vadd.f32 %v1850, %v1863
    %v1865 = vpop.f32.mrf.mxu0
    %v1866 = vadd.f32 %v1852, %v1865
    %1867 = vdwg.mxu0
    %1868 = vmatpush.bf16.msra.mxu0 %v1425
    %1869 = vmatpush.bf16.msra.mxu0 %v1424
    %1870 = vmatpush.bf16.msra.mxu0 %v1423
    %1871 = vmatpush.bf16.msra.mxu0 %v1422
    %1872 = vmatpush.bf16.msra.mxu0 %v1421
    %1873 = vmatpush.bf16.msra.mxu0 %v1420
    %1874 = vmatpush.bf16.msra.mxu0 %v1419
    %1875 = vmatpush.bf16.msra.mxu0 %v1418
    %1876 = vmatmul.bf16.gmra.mxu0 %v525
    %v1877 = vpop.f32.mrf.mxu0
    %v1878 = vadd.f32 %v1864, %v1877
    %v1879 = vpop.f32.mrf.mxu0
    %v1880 = vadd.f32 %v1866, %v1879
    %1881 = vdwg.mxu0
    %1882 = vmatpush.bf16.msra.mxu0 %v1433
    %1883 = vmatpush.bf16.msra.mxu0 %v1432
    %1884 = vmatpush.bf16.msra.mxu0 %v1431
    %1885 = vmatpush.bf16.msra.mxu0 %v1430
    %1886 = vmatpush.bf16.msra.mxu0 %v1429
    %1887 = vmatpush.bf16.msra.mxu0 %v1428
    %1888 = vmatpush.bf16.msra.mxu0 %v1427
    %1889 = vmatpush.bf16.msra.mxu0 %v1426
    %1890 = vmatmul.bf16.gmra.mxu0 %v526
    %v1891 = vpop.f32.mrf.mxu0
    %v1892 = vadd.f32 %v1878, %v1891
    %v1893 = vpop.f32.mrf.mxu0
    %v1894 = vadd.f32 %v1880, %v1893
    %1895 = vdwg.mxu0
    %1896 = vmatpush.bf16.msra.mxu0 %v1441
    %1897 = vmatpush.bf16.msra.mxu0 %v1440
    %1898 = vmatpush.bf16.msra.mxu0 %v1439
    %1899 = vmatpush.bf16.msra.mxu0 %v1438
    %1900 = vmatpush.bf16.msra.mxu0 %v1437
    %1901 = vmatpush.bf16.msra.mxu0 %v1436
    %1902 = vmatpush.bf16.msra.mxu0 %v1435
    %1903 = vmatpush.bf16.msra.mxu0 %v1434
    %1904 = vmatmul.bf16.gmra.mxu0 %v527
    %v1905 = vpop.f32.mrf.mxu0
    %v1906 = vadd.f32 %v1892, %v1905
    %v1907 = vpop.f32.mrf.mxu0
    %v1908 = vadd.f32 %v1894, %v1907
    %1909 = vdwg.mxu0
    %1910 = vmatpush.bf16.msra.mxu0 %v1449
    %1911 = vmatpush.bf16.msra.mxu0 %v1448
    %1912 = vmatpush.bf16.msra.mxu0 %v1447
    %1913 = vmatpush.bf16.msra.mxu0 %v1446
    %1914 = vmatpush.bf16.msra.mxu0 %v1445
    %1915 = vmatpush.bf16.msra.mxu0 %v1444
    %1916 = vmatpush.bf16.msra.mxu0 %v1443
    %1917 = vmatpush.bf16.msra.mxu0 %v1442
    %1918 = vmatmul.bf16.gmra.mxu0 %v528
    %v1919 = vpop.f32.mrf.mxu0
    %v1920 = vadd.f32 %v1906, %v1919
    %v1921 = vpop.f32.mrf.mxu0
    %v1922 = vadd.f32 %v1908, %v1921
    %1923 = vdwg.mxu0
    %1924 = vmatpush.bf16.msra.mxu0 %v1457
    %1925 = vmatpush.bf16.msra.mxu0 %v1456
    %1926 = vmatpush.bf16.msra.mxu0 %v1455
    %1927 = vmatpush.bf16.msra.mxu0 %v1454
    %1928 = vmatpush.bf16.msra.mxu0 %v1453
    %1929 = vmatpush.bf16.msra.mxu0 %v1452
    %1930 = vmatpush.bf16.msra.mxu0 %v1451
    %1931 = vmatpush.bf16.msra.mxu0 %v1450
    %1932 = vmatmul.bf16.gmra.mxu0 %v529
    %v1933 = vpop.f32.mrf.mxu0
    %v1934 = vadd.f32 %v1920, %v1933
    %v1935 = vpop.f32.mrf.mxu0
    %v1936 = vadd.f32 %v1922, %v1935
    %1937 = vdwg.mxu0
    %1938 = vmatpush.bf16.msra.mxu0 %v1465
    %1939 = vmatpush.bf16.msra.mxu0 %v1464
    %1940 = vmatpush.bf16.msra.mxu0 %v1463
    %1941 = vmatpush.bf16.msra.mxu0 %v1462
    %1942 = vmatpush.bf16.msra.mxu0 %v1461
    %1943 = vmatpush.bf16.msra.mxu0 %v1460
    %1944 = vmatpush.bf16.msra.mxu0 %v1459
    %1945 = vmatpush.bf16.msra.mxu0 %v1458
    %1946 = vmatmul.bf16.gmra.mxu0 %v530
    %v1947 = vpop.f32.mrf.mxu0
    %v1948 = vadd.f32 %v1934, %v1947
    %v1949 = vpop.f32.mrf.mxu0
    %v1950 = vadd.f32 %v1936, %v1949
    %1951 = vdwg.mxu0
    %1952 = vmatpush.bf16.msra.mxu0 %v1473
    %1953 = vmatpush.bf16.msra.mxu0 %v1472
    %1954 = vmatpush.bf16.msra.mxu0 %v1471
    %1955 = vmatpush.bf16.msra.mxu0 %v1470
    %1956 = vmatpush.bf16.msra.mxu0 %v1469
    %1957 = vmatpush.bf16.msra.mxu0 %v1468
    %1958 = vmatpush.bf16.msra.mxu0 %v1467
    %1959 = vmatpush.bf16.msra.mxu0 %v1466
    %1960 = vmatmul.bf16.gmra.mxu0 %v531
    %v1961 = vpop.f32.mrf.mxu0
    %v1962 = vadd.f32 %v1948, %v1961
    %v1963 = vpop.f32.mrf.mxu0
    %v1964 = vadd.f32 %v1950, %v1963
    %1965 = vdwg.mxu0
    %1966 = vmatpush.bf16.msra.mxu0 %v1481
    %1967 = vmatpush.bf16.msra.mxu0 %v1480
    %1968 = vmatpush.bf16.msra.mxu0 %v1479
    %1969 = vmatpush.bf16.msra.mxu0 %v1478
    %1970 = vmatpush.bf16.msra.mxu0 %v1477
    %1971 = vmatpush.bf16.msra.mxu0 %v1476
    %1972 = vmatpush.bf16.msra.mxu0 %v1475
    %1973 = vmatpush.bf16.msra.mxu0 %v1474
    %1974 = vmatmul.bf16.gmra.mxu0 %v532
    %v1975 = vpop.f32.mrf.mxu0
    %v1976 = vadd.f32 %v1962, %v1975
    %v1977 = vpop.f32.mrf.mxu0
    %v1978 = vadd.f32 %v1964, %v1977
    %1979 = vdwg.mxu0
    %1980 = vmatpush.bf16.msra.mxu0 %v1489
    %1981 = vmatpush.bf16.msra.mxu0 %v1488
    %1982 = vmatpush.bf16.msra.mxu0 %v1487
    %1983 = vmatpush.bf16.msra.mxu0 %v1486
    %1984 = vmatpush.bf16.msra.mxu0 %v1485
    %1985 = vmatpush.bf16.msra.mxu0 %v1484
    %1986 = vmatpush.bf16.msra.mxu0 %v1483
    %1987 = vmatpush.bf16.msra.mxu0 %v1482
    %1988 = vmatmul.bf16.gmra.mxu0 %v533
    %v1989 = vpop.f32.mrf.mxu0
    %v1990 = vadd.f32 %v1976, %v1989
    %v1991 = vpop.f32.mrf.mxu0
    %v1992 = vadd.f32 %v1978, %v1991
    %1993 = vdwg.mxu0
    %1994 = vmatpush.bf16.msra.mxu0 %v1497
    %1995 = vmatpush.bf16.msra.mxu0 %v1496
    %1996 = vmatpush.bf16.msra.mxu0 %v1495
    %1997 = vmatpush.bf16.msra.mxu0 %v1494
    %1998 = vmatpush.bf16.msra.mxu0 %v1493
    %1999 = vmatpush.bf16.msra.mxu0 %v1492
    %2000 = vmatpush.bf16.msra.mxu0 %v1491
    %2001 = vmatpush.bf16.msra.mxu0 %v1490
    %2002 = vmatmul.bf16.gmra.mxu0 %v534
    %v2003 = vpop.f32.mrf.mxu0
    %v2004 = vadd.f32 %v1990, %v2003
    %v2005 = vpop.f32.mrf.mxu0
    %v2006 = vadd.f32 %v1992, %v2005
    %2007 = vdwg.mxu0
    %2008 = vmatpush.bf16.msra.mxu0 %v1505
    %2009 = vmatpush.bf16.msra.mxu0 %v1504
    %2010 = vmatpush.bf16.msra.mxu0 %v1503
    %2011 = vmatpush.bf16.msra.mxu0 %v1502
    %2012 = vmatpush.bf16.msra.mxu0 %v1501
    %2013 = vmatpush.bf16.msra.mxu0 %v1500
    %2014 = vmatpush.bf16.msra.mxu0 %v1499
    %2015 = vmatpush.bf16.msra.mxu0 %v1498
    %2016 = vmatmul.bf16.gmra.mxu0 %v535
    %v2017 = vpop.f32.mrf.mxu0
    %v2018 = vadd.f32 %v2004, %v2017
    %v2019 = vpop.f32.mrf.mxu0
    %v2020 = vadd.f32 %v2006, %v2019
    %2021 = vdwg.mxu0
    %2022 = vmatpush.bf16.msra.mxu0 %v1513
    %2023 = vmatpush.bf16.msra.mxu0 %v1512
    %2024 = vmatpush.bf16.msra.mxu0 %v1511
    %2025 = vmatpush.bf16.msra.mxu0 %v1510
    %2026 = vmatpush.bf16.msra.mxu0 %v1509
    %2027 = vmatpush.bf16.msra.mxu0 %v1508
    %2028 = vmatpush.bf16.msra.mxu0 %v1507
    %2029 = vmatpush.bf16.msra.mxu0 %v1506
    %2030 = vmatmul.bf16.gmra.mxu0 %v536
    %v2031 = vpop.f32.mrf.mxu0
    %v2032 = vadd.f32 %v2018, %v2031
    %v2033 = vpop.f32.mrf.mxu0
    %v2034 = vadd.f32 %v2020, %v2033
    %2035 = vdwg.mxu0
    %2036 = vmatpush.bf16.msra.mxu0 %v1521
    %2037 = vmatpush.bf16.msra.mxu0 %v1520
    %2038 = vmatpush.bf16.msra.mxu0 %v1519
    %2039 = vmatpush.bf16.msra.mxu0 %v1518
    %2040 = vmatpush.bf16.msra.mxu0 %v1517
    %2041 = vmatpush.bf16.msra.mxu0 %v1516
    %2042 = vmatpush.bf16.msra.mxu0 %v1515
    %2043 = vmatpush.bf16.msra.mxu0 %v1514
    %2044 = vmatmul.bf16.gmra.mxu0 %v537
    %v2045 = vpop.f32.mrf.mxu0
    %v2046 = vadd.f32 %v2032, %v2045
    %v2047 = vpop.f32.mrf.mxu0
    %v2048 = vadd.f32 %v2034, %v2047
    %2049 = vdwg.mxu0
    %v2050 = vmax.f32 %v2046, 0.0
    %v2051 = vmax.f32 %v2048, 0.0
    %2052 = vst [vmem:[%s3] sm:$0xff] %v2050
    %2053 = vst [vmem:[%s3 + $0x8] sm:$0xff] %v2051
    // Predicated region
    $region18: #{lazynet_forward.1} parent=1 // pred_check
      _
    $region19: #{lazynet_forward.1} parent=1 // pred_check_branch
      %2055 = sbr.rel (0) target = $region21
    $region20: #{lazynet_forward.1} parent=1 // pred_region
      _
    $region21: #{lazynet_forward.1} parent=1 // pred_fallthru
      _
    // Predicated region
    $region22: #{lazynet_forward.1} parent=1 // pred_check
      _
    $region23: #{lazynet_forward.1} parent=1 // pred_check_branch
      %2057 = sbr.rel (0) target = $region25
    $region24: #{lazynet_forward.1} parent=1 // pred_region
      _
    $region25: #{lazynet_forward.1} parent=1 // pred_fallthru
      _
    %2058 = vsyncpa [#allocation3], 1

</llo_original>
